<compile_context>
chip_gen: v7x
topology: tpu7x:2x2x1
jax: 0.10.0
libtpu: 0.0.40
codegen_flags: <defaults>
</compile_context>

<pallas_src>
import functools

import jax
import jax.numpy as jnp
from jax.experimental import pallas as pl
from jax.experimental.pallas import tpu as pltpu


def _layernorm(x, g, b, eps=1e-5):
    mu = jnp.mean(x, axis=-1, keepdims=True)
    var = jnp.mean((x - mu) ** 2, axis=-1, keepdims=True)
    return (x - mu) * jax.lax.rsqrt(var + eps) * g + b


# ----------------------------- Pallas kernel -----------------------------

def block_kernel(x_ref,
                 ln1_g_ref, ln1_b_ref,
                 wqkv_ref, wproj_ref, bproj_ref,
                 ln2_g_ref, ln2_b_ref,
                 w1_ref, b1_ref, w2_ref, b2_ref,
                 o_ref,
                 *, seq, n_heads, head_size):
    """One transformer Block applied to a single batch element's (T, E) slab."""
    x = x_ref[...]                                                        # (T, E) f32

    # ----- multi-head self-attention -----
    xn = _layernorm(x, ln1_g_ref[...], ln1_b_ref[...])                    # (T, E)

    # Batched-over-(q/k/v, head) projection.  wqkv is (3*n_heads, E, head_size);
    # leading-batch-dim dot_general, so no lane slicing / reshapes / k.T needed.
    g = 3 * n_heads
    xn3 = jnp.broadcast_to(xn, (g, seq, xn.shape[-1]))                    # hoisted once
    qkv = jnp.einsum('gte,gek->gtk', xn3, wqkv_ref[...],
                     preferred_element_type=jnp.float32)                  # (3h, T, hs)

    q = qkv[:n_heads] * (head_size ** -0.5)                               # (h, T, hs)
    k = qkv[n_heads:2 * n_heads]                                          # (h, T, hs)
    v = qkv[2 * n_heads:]                                                 # (h, T, hs)

    s = jnp.einsum('htk,hsk->hts', q, k,
                   preferred_element_type=jnp.float32)                    # (h, T, T)
    p = jnp.exp(s - jnp.max(s, axis=-1, keepdims=True))
    denom = jnp.sum(p, axis=-1, keepdims=True)                            # (h, T, 1)
    pv = jnp.einsum('hts,hsk->htk', p, v,
                    preferred_element_type=jnp.float32)                   # (h, T, hs)
    # post-PV normalization on the small (h, T, hs) result; approx recip -> EUP slot
    pv = pv * pl.reciprocal(denom, approx=True)

    # output projection: batched per-head matmul then sum over heads (no lane concat)
    ctx = jnp.einsum('htk,hke->hte', pv, wproj_ref[...],
                     preferred_element_type=jnp.float32)                  # (h, T, E)
    x = x + jnp.sum(ctx, axis=0) + bproj_ref[...]

    # ----- feed-forward -----
    xn2 = _layernorm(x, ln2_g_ref[...], ln2_b_ref[...])
    h1 = jnp.dot(xn2, w1_ref[...], preferred_element_type=jnp.float32) + b1_ref[...]
    h1 = jnp.maximum(h1, 0.0)
    y = jnp.dot(h1, w2_ref[...], preferred_element_type=jnp.float32) + b2_ref[...]

    o_ref[...] = (x + y).astype(o_ref.dtype)


def block_forward(x, params, *, n_heads, head_size):
    """Applies one transformer Block to x of shape (B, T, E)."""
    B, T, E = x.shape
    H = n_heads * head_size
    kernel = functools.partial(block_kernel, seq=T,
                               n_heads=n_heads, head_size=head_size)

    def const_spec(a):
        nd = a.ndim
        # constant index map -> weight block stays VMEM-resident across grid steps
        return pl.BlockSpec(a.shape, lambda b, _nd=nd: (0,) * _nd)

    x_spec = pl.BlockSpec((T, E), lambda b: (b, 0))
    out_spec = pl.BlockSpec((T, E), lambda b: (b, 0))

    # advisory cost estimate so XLA can overlap the custom call with neighbors
    flops = B * (2 * T * E * 3 * H                 # fused QKV projection
                 + 2 * n_heads * T * T * head_size * 2   # scores + P@V
                 + 2 * n_heads * T * head_size * E       # output projection
                 + 2 * T * E * 4 * E * 2)                # FFN (two matmuls)
    transcendentals = B * (n_heads * T * T + n_heads * T)  # exp + reciprocal
    weight_bytes = sum(int(p.size) * 4 for p in params)
    bytes_accessed = 2 * B * T * E * 4 + weight_bytes

    out = pl.pallas_call(
        kernel,
        out_shape=jax.ShapeDtypeStruct((B * T, E), jnp.float32),
        grid_spec=pltpu.PrefetchScalarGridSpec(
            num_scalar_prefetch=0,
            grid=(B,),
            in_specs=[x_spec] + [const_spec(p) for p in params],
            out_specs=out_spec,
        ),
        compiler_params=pltpu.CompilerParams(
            dimension_semantics=("parallel",)),
        cost_estimate=pl.CostEstimate(flops=flops,
                                      transcendentals=transcendentals,
                                      bytes_accessed=bytes_accessed),
    )(x.reshape(B * T, E), *params)
    return out.reshape(B, T, E)


# --------------------------- parameter creation ---------------------------

def init_params(key, *, n_embed, n_heads):
    head_size = max(n_embed // n_heads, 1)
    H = n_heads * head_size
    f32 = jnp.float32
    ks = jax.random.split(key, 9)

    # per-(q/k/v, head) weights stacked on the leading dim: (3*n_heads, E, head_size)
    wq = jax.random.normal(ks[0], (n_heads, n_embed, head_size), f32) * 0.05
    wk = jax.random.normal(ks[1], (n_heads, n_embed, head_size), f32) * 0.05
    wv = jax.random.normal(ks[2], (n_heads, n_embed, head_size), f32) * 0.05
    wqkv = jnp.concatenate([wq, wk, wv], axis=0)                          # (3h, E, hs)

    wproj = (jax.random.normal(ks[3], (H, n_embed), f32) * 0.05
             ).reshape(n_heads, head_size, n_embed)                       # (h, hs, E)

    params = [
        jnp.ones((1, n_embed), f32),                                       # ln1 gamma
        jnp.zeros((1, n_embed), f32),                                      # ln1 beta
        wqkv,                                                              # Wqkv (3h,E,hs)
        wproj,                                                             # Wproj (h,hs,E)
        jax.random.normal(ks[4], (1, n_embed), f32) * 0.01,                # proj b
        jnp.ones((1, n_embed), f32),                                       # ln2 gamma
        jnp.zeros((1, n_embed), f32),                                      # ln2 beta
        jax.random.normal(ks[5], (n_embed, 4 * n_embed), f32) * 0.05,      # ff W1 (in,out)
        jax.random.normal(ks[6], (1, 4 * n_embed), f32) * 0.01,            # ff b1
        jax.random.normal(ks[7], (4 * n_embed, n_embed), f32) * 0.05,      # ff W2 (in,out)
        jax.random.normal(ks[8], (1, n_embed), f32) * 0.01,                # ff b2
    ]
    return params, head_size


# ------------------------------ pure-JAX ref ------------------------------

def _ref_forward(x, params, n_heads, head_size):
    (ln1g, ln1b, wqkv, wp, bp, ln2g, ln2b, w1, b1, w2, b2) = params
    xn = _layernorm(x, ln1g, ln1b)
    outs = []
    for h in range(n_heads):
        q = xn @ wqkv[h]
        k = xn @ wqkv[n_heads + h]
        v = xn @ wqkv[2 * n_heads + h]
        s = (q @ jnp.swapaxes(k, -1, -2)) * head_size ** (-0.5)
        p = jax.nn.softmax(s, axis=-1)
        outs.append(p @ v)
    cat = jnp.concatenate(outs, axis=-1)
    x = x + cat @ wp.reshape(n_heads * head_size, -1) + bp
    xn2 = _layernorm(x, ln2g, ln2b)
    x = x + jnp.maximum(xn2 @ w1 + b1, 0.0) @ w2 + b2
    return x


# ---------------------------------- main ----------------------------------

if __name__ == "__main__":
    n_embed, n_heads = 32, 4
    B, T = 2, 8

    key = jax.random.PRNGKey(0)
    k_params, k_x = jax.random.split(key)
    params, head_size = init_params(k_params, n_embed=n_embed, n_heads=n_heads)
    x = jax.random.normal(k_x, (B, T, n_embed), jnp.float32)

    out = block_forward(x, params, n_heads=n_heads, head_size=head_size)
    out = jax.block_until_ready(out)

    ref = _ref_forward(x, params, n_heads, head_size)
    assert out.shape == (B, T, n_embed)
    # tolerance slightly loosened for pl.reciprocal(approx=True)
    assert jnp.allclose(out, ref, atol=1e-2, rtol=1e-2), float(jnp.max(jnp.abs(out - ref)))

    print("KERNEL_OK")
</pallas_src>

<mosaic_0001>
module attributes {stable_mosaic.version = 11 : i64} {
  func.func @block_kernel(%arg0: i32, %arg1: memref<8x32xf32, #tpu.memory_space<vmem>>, %arg2: memref<1x32xf32, #tpu.memory_space<vmem>>, %arg3: memref<1x32xf32, #tpu.memory_space<vmem>>, %arg4: memref<12x32x8xf32, #tpu.memory_space<vmem>>, %arg5: memref<4x8x32xf32, #tpu.memory_space<vmem>>, %arg6: memref<1x32xf32, #tpu.memory_space<vmem>>, %arg7: memref<1x32xf32, #tpu.memory_space<vmem>>, %arg8: memref<1x32xf32, #tpu.memory_space<vmem>>, %arg9: memref<32x128xf32, #tpu.memory_space<vmem>>, %arg10: memref<1x128xf32, #tpu.memory_space<vmem>>, %arg11: memref<128x32xf32, #tpu.memory_space<vmem>>, %arg12: memref<1x32xf32, #tpu.memory_space<vmem>>, %arg13: memref<8x32xf32, #tpu.memory_space<vmem>>) attributes {dimension_semantics = [#tpu.dimension_semantics<parallel>], iteration_bounds = array<i64: 2>, scalar_prefetch = 0 : i64, scratch_operands = 0 : i64, tpu.core_type = #tpu.core_type<tc>, window_params = [{transform_indices = @transform_0, window_bounds = array<i64: 8, 32>}, {pipeline_mode = #tpu.pipeline_mode<synchronous>, transform_indices = @transform_1, window_bounds = array<i64: 1, 32>}, {pipeline_mode = #tpu.pipeline_mode<synchronous>, transform_indices = @transform_2, window_bounds = array<i64: 1, 32>}, {pipeline_mode = #tpu.pipeline_mode<synchronous>, transform_indices = @transform_3, window_bounds = array<i64: 12, 32, 8>}, {pipeline_mode = #tpu.pipeline_mode<synchronous>, transform_indices = @transform_4, window_bounds = array<i64: 4, 8, 32>}, {pipeline_mode = #tpu.pipeline_mode<synchronous>, transform_indices = @transform_5, window_bounds = array<i64: 1, 32>}, {pipeline_mode = #tpu.pipeline_mode<synchronous>, transform_indices = @transform_6, window_bounds = array<i64: 1, 32>}, {pipeline_mode = #tpu.pipeline_mode<synchronous>, transform_indices = @transform_7, window_bounds = array<i64: 1, 32>}, {pipeline_mode = #tpu.pipeline_mode<synchronous>, transform_indices = @transform_8, window_bounds = array<i64: 32, 128>}, {pipeline_mode = #tpu.pipeline_mode<synchronous>, transform_indices = @transform_9, window_bounds = array<i64: 1, 128>}, {pipeline_mode = #tpu.pipeline_mode<synchronous>, transform_indices = @transform_10, window_bounds = array<i64: 128, 32>}, {pipeline_mode = #tpu.pipeline_mode<synchronous>, transform_indices = @transform_11, window_bounds = array<i64: 1, 32>}, {transform_indices = @transform_12, window_bounds = array<i64: 8, 32>}]} {
    %c0 = arith.constant 0 : index
    %c0_0 = arith.constant 0 : index
    %0 = vector.load %arg1[%c0, %c0_0] : memref<8x32xf32, #tpu.memory_space<vmem>>, vector<8x32xf32>
    %c0_1 = arith.constant 0 : index
    %c0_2 = arith.constant 0 : index
    %1 = vector.load %arg2[%c0_1, %c0_2] : memref<1x32xf32, #tpu.memory_space<vmem>>, vector<1x32xf32>
    %c0_3 = arith.constant 0 : index
    %c0_4 = arith.constant 0 : index
    %2 = vector.load %arg3[%c0_3, %c0_4] : memref<1x32xf32, #tpu.memory_space<vmem>>, vector<1x32xf32>
    %cst = arith.constant dense<0.000000e+00> : vector<8xf32>
    %3 = vector.multi_reduction <add>, %0, %cst [1] : vector<8x32xf32> to vector<8xf32>
    %4 = vector.shape_cast %3 : vector<8xf32> to vector<8x1xf32>
    %cst_5 = arith.constant 3.200000e+01 : f32
    %5 = vector.broadcast %cst_5 : f32 to vector<8x1xf32>
    %6 = arith.divf %4, %5 : vector<8x1xf32>
    %7 = vector.broadcast %6 : vector<8x1xf32> to vector<8x32xf32>
    %8 = arith.subf %0, %7 : vector<8x32xf32>
    %9 = arith.mulf %8, %8 : vector<8x32xf32>
    %cst_6 = arith.constant dense<0.000000e+00> : vector<8xf32>
    %10 = vector.multi_reduction <add>, %9, %cst_6 [1] : vector<8x32xf32> to vector<8xf32>
    %11 = vector.shape_cast %10 : vector<8xf32> to vector<8x1xf32>
    %cst_7 = arith.constant 3.200000e+01 : f32
    %12 = vector.broadcast %cst_7 : f32 to vector<8x1xf32>
    %13 = arith.divf %11, %12 : vector<8x1xf32>
    %14 = vector.broadcast %6 : vector<8x1xf32> to vector<8x32xf32>
    %15 = arith.subf %0, %14 : vector<8x32xf32>
    %cst_8 = arith.constant 9.99999974E-6 : f32
    %16 = vector.broadcast %cst_8 : f32 to vector<8x1xf32>
    %17 = arith.addf %13, %16 : vector<8x1xf32>
    %18 = math.rsqrt %17 : vector<8x1xf32>
    %19 = vector.broadcast %18 : vector<8x1xf32> to vector<8x32xf32>
    %20 = arith.mulf %15, %19 : vector<8x32xf32>
    %21 = vector.broadcast %1 : vector<1x32xf32> to vector<8x32xf32>
    %22 = arith.mulf %20, %21 : vector<8x32xf32>
    %23 = vector.broadcast %2 : vector<1x32xf32> to vector<8x32xf32>
    %24 = arith.addf %22, %23 : vector<8x32xf32>
    %25 = vector.shape_cast %24 : vector<8x32xf32> to vector<1x8x32xf32>
    %26 = vector.broadcast %25 : vector<1x8x32xf32> to vector<12x8x32xf32>
    %c0_9 = arith.constant 0 : index
    %c0_10 = arith.constant 0 : index
    %c0_11 = arith.constant 0 : index
    %27 = vector.load %arg4[%c0_9, %c0_10, %c0_11] : memref<12x32x8xf32, #tpu.memory_space<vmem>>, vector<12x32x8xf32>
    "tpu.trace_start"() <{level = 10 : i32, message = "gte,gek->gtk"}> : () -> ()
    %cst_12 = arith.constant dense<0.000000e+00> : vector<12x8x8xf32>
    %28 = tpu.matmul %26, %27, %cst_12 {dimension_numbers = #tpu.dot_dimension_numbers<[2], [1], [1], [2], [0, 0, 0, 1, 1, 2], [0], [0]>} : vector<12x8x32xf32>, vector<12x32x8xf32>, vector<12x8x8xf32> -> vector<12x8x8xf32>
    "tpu.trace_stop"() : () -> ()
    %29 = vector.extract_strided_slice %28 {offsets = [0, 0, 0], sizes = [4, 8, 8], strides = [1, 1, 1]} : vector<12x8x8xf32> to vector<4x8x8xf32>
    %cst_13 = arith.constant 0.353553385 : f32
    %30 = vector.broadcast %cst_13 : f32 to vector<4x8x8xf32>
    %31 = arith.mulf %29, %30 : vector<4x8x8xf32>
    %32 = vector.extract_strided_slice %28 {offsets = [4, 0, 0], sizes = [4, 8, 8], strides = [1, 1, 1]} : vector<12x8x8xf32> to vector<4x8x8xf32>
    %33 = vector.extract_strided_slice %28 {offsets = [8, 0, 0], sizes = [4, 8, 8], strides = [1, 1, 1]} : vector<12x8x8xf32> to vector<4x8x8xf32>
    "tpu.trace_start"() <{level = 10 : i32, message = "htk,hsk->hts"}> : () -> ()
    %cst_14 = arith.constant dense<0.000000e+00> : vector<4x8x8xf32>
    %34 = tpu.matmul %31, %32, %cst_14 {dimension_numbers = #tpu.dot_dimension_numbers<[2], [2], [1], [1], [0, 0, 0, 1, 1, 1], [0], [0]>} : vector<4x8x8xf32>, vector<4x8x8xf32>, vector<4x8x8xf32> -> vector<4x8x8xf32>
    "tpu.trace_stop"() : () -> ()
    %cst_15 = arith.constant dense<0xFF800000> : vector<4x8xf32>
    %35 = vector.multi_reduction <maximumf>, %34, %cst_15 [2] : vector<4x8x8xf32> to vector<4x8xf32>
    %36 = vector.shape_cast %35 : vector<4x8xf32> to vector<4x8x1xf32>
    %37 = vector.broadcast %36 : vector<4x8x1xf32> to vector<4x8x8xf32>
    %38 = arith.subf %34, %37 : vector<4x8x8xf32>
    %39 = math.exp %38 : vector<4x8x8xf32>
    %cst_16 = arith.constant dense<0.000000e+00> : vector<4x8xf32>
    %40 = vector.multi_reduction <add>, %39, %cst_16 [2] : vector<4x8x8xf32> to vector<4x8xf32>
    %41 = vector.shape_cast %40 : vector<4x8xf32> to vector<4x8x1xf32>
    "tpu.trace_start"() <{level = 10 : i32, message = "hts,hsk->htk"}> : () -> ()
    %cst_17 = arith.constant dense<0.000000e+00> : vector<4x8x8xf32>
    %42 = tpu.matmul %39, %33, %cst_17 {dimension_numbers = #tpu.dot_dimension_numbers<[2], [1], [1], [2], [0, 0, 0, 1, 1, 2], [0], [0]>} : vector<4x8x8xf32>, vector<4x8x8xf32>, vector<4x8x8xf32> -> vector<4x8x8xf32>
    "tpu.trace_stop"() : () -> ()
    %43 = tpu.reciprocal %41 {approx = true} : vector<4x8x1xf32> -> vector<4x8x1xf32>
    %44 = vector.broadcast %43 : vector<4x8x1xf32> to vector<4x8x8xf32>
    %45 = arith.mulf %42, %44 : vector<4x8x8xf32>
    %c0_18 = arith.constant 0 : index
    %c0_19 = arith.constant 0 : index
    %c0_20 = arith.constant 0 : index
    %46 = vector.load %arg5[%c0_18, %c0_19, %c0_20] : memref<4x8x32xf32, #tpu.memory_space<vmem>>, vector<4x8x32xf32>
    "tpu.trace_start"() <{level = 10 : i32, message = "htk,hke->hte"}> : () -> ()
    %cst_21 = arith.constant dense<0.000000e+00> : vector<4x8x32xf32>
    %47 = tpu.matmul %45, %46, %cst_21 {dimension_numbers = #tpu.dot_dimension_numbers<[2], [1], [1], [2], [0, 0, 0, 1, 1, 2], [0], [0]>} : vector<4x8x8xf32>, vector<4x8x32xf32>, vector<4x8x32xf32> -> vector<4x8x32xf32>
    "tpu.trace_stop"() : () -> ()
    %cst_22 = arith.constant dense<0.000000e+00> : vector<8x32xf32>
    %48 = vector.multi_reduction <add>, %47, %cst_22 [0] : vector<4x8x32xf32> to vector<8x32xf32>
    %49 = arith.addf %0, %48 : vector<8x32xf32>
    %c0_23 = arith.constant 0 : index
    %c0_24 = arith.constant 0 : index
    %50 = vector.load %arg6[%c0_23, %c0_24] : memref<1x32xf32, #tpu.memory_space<vmem>>, vector<1x32xf32>
    %51 = vector.broadcast %50 : vector<1x32xf32> to vector<8x32xf32>
    %52 = arith.addf %49, %51 : vector<8x32xf32>
    %c0_25 = arith.constant 0 : index
    %c0_26 = arith.constant 0 : index
    %53 = vector.load %arg7[%c0_25, %c0_26] : memref<1x32xf32, #tpu.memory_space<vmem>>, vector<1x32xf32>
    %c0_27 = arith.constant 0 : index
    %c0_28 = arith.constant 0 : index
    %54 = vector.load %arg8[%c0_27, %c0_28] : memref<1x32xf32, #tpu.memory_space<vmem>>, vector<1x32xf32>
    %cst_29 = arith.constant dense<0.000000e+00> : vector<8xf32>
    %55 = vector.multi_reduction <add>, %52, %cst_29 [1] : vector<8x32xf32> to vector<8xf32>
    %56 = vector.shape_cast %55 : vector<8xf32> to vector<8x1xf32>
    %cst_30 = arith.constant 3.200000e+01 : f32
    %57 = vector.broadcast %cst_30 : f32 to vector<8x1xf32>
    %58 = arith.divf %56, %57 : vector<8x1xf32>
    %59 = vector.broadcast %58 : vector<8x1xf32> to vector<8x32xf32>
    %60 = arith.subf %52, %59 : vector<8x32xf32>
    %61 = arith.mulf %60, %60 : vector<8x32xf32>
    %cst_31 = arith.constant dense<0.000000e+00> : vector<8xf32>
    %62 = vector.multi_reduction <add>, %61, %cst_31 [1] : vector<8x32xf32> to vector<8xf32>
    %63 = vector.shape_cast %62 : vector<8xf32> to vector<8x1xf32>
    %cst_32 = arith.constant 3.200000e+01 : f32
    %64 = vector.broadcast %cst_32 : f32 to vector<8x1xf32>
    %65 = arith.divf %63, %64 : vector<8x1xf32>
    %66 = vector.broadcast %58 : vector<8x1xf32> to vector<8x32xf32>
    %67 = arith.subf %52, %66 : vector<8x32xf32>
    %cst_33 = arith.constant 9.99999974E-6 : f32
    %68 = vector.broadcast %cst_33 : f32 to vector<8x1xf32>
    %69 = arith.addf %65, %68 : vector<8x1xf32>
    %70 = math.rsqrt %69 : vector<8x1xf32>
    %71 = vector.broadcast %70 : vector<8x1xf32> to vector<8x32xf32>
    %72 = arith.mulf %67, %71 : vector<8x32xf32>
    %73 = vector.broadcast %53 : vector<1x32xf32> to vector<8x32xf32>
    %74 = arith.mulf %72, %73 : vector<8x32xf32>
    %75 = vector.broadcast %54 : vector<1x32xf32> to vector<8x32xf32>
    %76 = arith.addf %74, %75 : vector<8x32xf32>
    %c0_34 = arith.constant 0 : index
    %c0_35 = arith.constant 0 : index
    %77 = vector.load %arg9[%c0_34, %c0_35] : memref<32x128xf32, #tpu.memory_space<vmem>>, vector<32x128xf32>
    %cst_36 = arith.constant dense<0.000000e+00> : vector<8x128xf32>
    %78 = tpu.matmul %76, %77, %cst_36 {dimension_numbers = #tpu.dot_dimension_numbers<[1], [0], [0], [1], [0, 0, 1, 1], [], []>} : vector<8x32xf32>, vector<32x128xf32>, vector<8x128xf32> -> vector<8x128xf32>
    %c0_37 = arith.constant 0 : index
    %c0_38 = arith.constant 0 : index
    %79 = vector.load %arg10[%c0_37, %c0_38] : memref<1x128xf32, #tpu.memory_space<vmem>>, vector<1x128xf32>
    %80 = vector.broadcast %79 : vector<1x128xf32> to vector<8x128xf32>
    %81 = arith.addf %78, %80 : vector<8x128xf32>
    %cst_39 = arith.constant 0.000000e+00 : f32
    %82 = vector.broadcast %cst_39 : f32 to vector<8x128xf32>
    %83 = arith.maximumf %81, %82 : vector<8x128xf32>
    %c0_40 = arith.constant 0 : index
    %c0_41 = arith.constant 0 : index
    %84 = vector.load %arg11[%c0_40, %c0_41] : memref<128x32xf32, #tpu.memory_space<vmem>>, vector<128x32xf32>
    %cst_42 = arith.constant dense<0.000000e+00> : vector<8x32xf32>
    %85 = tpu.matmul %83, %84, %cst_42 {dimension_numbers = #tpu.dot_dimension_numbers<[1], [0], [0], [1], [0, 0, 1, 1], [], []>} : vector<8x128xf32>, vector<128x32xf32>, vector<8x32xf32> -> vector<8x32xf32>
    %c0_43 = arith.constant 0 : index
    %c0_44 = arith.constant 0 : index
    %86 = vector.load %arg12[%c0_43, %c0_44] : memref<1x32xf32, #tpu.memory_space<vmem>>, vector<1x32xf32>
    %87 = vector.broadcast %86 : vector<1x32xf32> to vector<8x32xf32>
    %88 = arith.addf %85, %87 : vector<8x32xf32>
    %89 = arith.addf %52, %88 : vector<8x32xf32>
    %c0_45 = arith.constant 0 : index
    %c0_46 = arith.constant 0 : index
    %90 = vector.load %arg13[%c0_45, %c0_46] : memref<8x32xf32, #tpu.memory_space<vmem>>, vector<8x32xf32>
    tpu.vector_store %arg13[%c0_45, %c0_46], %89 {strides = array<i32>} : memref<8x32xf32, #tpu.memory_space<vmem>>, vector<8x32xf32>,
    return
  }
  func.func @transform_0(%arg0: i32) -> (i32, i32) {
    %c0_i32 = arith.constant 0 : i32
    %c0_i32_0 = arith.constant 0 : i32
    return %arg0, %c0_i32 : i32, i32
  }
  func.func @transform_1(%arg0: i32) -> (i32, i32) {
    %c0_i32 = arith.constant 0 : i32
    %c0_i32_0 = arith.constant 0 : i32
    %c0_i32_1 = arith.constant 0 : i32
    return %c0_i32, %c0_i32_0 : i32, i32
  }
  func.func @transform_2(%arg0: i32) -> (i32, i32) {
    %c0_i32 = arith.constant 0 : i32
    %c0_i32_0 = arith.constant 0 : i32
    %c0_i32_1 = arith.constant 0 : i32
    return %c0_i32, %c0_i32_0 : i32, i32
  }
  func.func @transform_3(%arg0: i32) -> (i32, i32, i32) {
    %c0_i32 = arith.constant 0 : i32
    %c0_i32_0 = arith.constant 0 : i32
    %c0_i32_1 = arith.constant 0 : i32
    %c0_i32_2 = arith.constant 0 : i32
    return %c0_i32, %c0_i32_0, %c0_i32_1 : i32, i32, i32
  }
  func.func @transform_4(%arg0: i32) -> (i32, i32, i32) {
    %c0_i32 = arith.constant 0 : i32
    %c0_i32_0 = arith.constant 0 : i32
    %c0_i32_1 = arith.constant 0 : i32
    %c0_i32_2 = arith.constant 0 : i32
    return %c0_i32, %c0_i32_0, %c0_i32_1 : i32, i32, i32
  }
  func.func @transform_5(%arg0: i32) -> (i32, i32) {
    %c0_i32 = arith.constant 0 : i32
    %c0_i32_0 = arith.constant 0 : i32
    %c0_i32_1 = arith.constant 0 : i32
    return %c0_i32, %c0_i32_0 : i32, i32
  }
  func.func @transform_6(%arg0: i32) -> (i32, i32) {
    %c0_i32 = arith.constant 0 : i32
    %c0_i32_0 = arith.constant 0 : i32
    %c0_i32_1 = arith.constant 0 : i32
    return %c0_i32, %c0_i32_0 : i32, i32
  }
  func.func @transform_7(%arg0: i32) -> (i32, i32) {
    %c0_i32 = arith.constant 0 : i32
    %c0_i32_0 = arith.constant 0 : i32
    %c0_i32_1 = arith.constant 0 : i32
    return %c0_i32, %c0_i32_0 : i32, i32
  }
  func.func @transform_8(%arg0: i32) -> (i32, i32) {
    %c0_i32 = arith.constant 0 : i32
    %c0_i32_0 = arith.constant 0 : i32
    %c0_i32_1 = arith.constant 0 : i32
    return %c0_i32, %c0_i32_0 : i32, i32
  }
  func.func @transform_9(%arg0: i32) -> (i32, i32) {
    %c0_i32 = arith.constant 0 : i32
    %c0_i32_0 = arith.constant 0 : i32
    %c0_i32_1 = arith.constant 0 : i32
    return %c0_i32, %c0_i32_0 : i32, i32
  }
  func.func @transform_10(%arg0: i32) -> (i32, i32) {
    %c0_i32 = arith.constant 0 : i32
    %c0_i32_0 = arith.constant 0 : i32
    %c0_i32_1 = arith.constant 0 : i32
    return %c0_i32, %c0_i32_0 : i32, i32
  }
  func.func @transform_11(%arg0: i32) -> (i32, i32) {
    %c0_i32 = arith.constant 0 : i32
    %c0_i32_0 = arith.constant 0 : i32
    %c0_i32_1 = arith.constant 0 : i32
    return %c0_i32, %c0_i32_0 : i32, i32
  }
  func.func @transform_12(%arg0: i32) -> (i32, i32) {
    %c0_i32 = arith.constant 0 : i32
    %c0_i32_0 = arith.constant 0 : i32
    return %arg0, %c0_i32 : i32, i32
  }
}

</mosaic_0001>

<llo_original>
// kernel: tpu_custom_call.1
$region0: #{tpu_custom_call.1}
  #allocation0 [shape = 'u32[]', space=smem, size = 0x4, offset = 0x4, fixed_abs, tag = 'smem constant byte address 0x4 - core index']
  #allocation1 [shape = 'u32[144,128]{1,0:T(1,128)}', space=vmem, size = 0x12000, scoped, tag = 'internal scratch']
  %s0 = inlined_call_operand.vmem [shape: f32[16,32], index: 0, kind: input, shape index: {}]
  %s1 = inlined_call_operand.vmem [shape: f32[1,32], index: 1, kind: input, shape index: {}]
  %s2 = inlined_call_operand.vmem [shape: f32[1,32], index: 2, kind: input, shape index: {}]
  %s3 = inlined_call_operand.vmem [shape: f32[12,32,8], index: 3, kind: input, shape index: {}]
  %s4 = inlined_call_operand.vmem [shape: f32[4,8,32], index: 4, kind: input, shape index: {}]
  %s5 = inlined_call_operand.vmem [shape: f32[1,32], index: 5, kind: input, shape index: {}]
  %s6 = inlined_call_operand.vmem [shape: f32[1,32], index: 6, kind: input, shape index: {}]
  %s7 = inlined_call_operand.vmem [shape: f32[1,32], index: 7, kind: input, shape index: {}]
  %s8 = inlined_call_operand.vmem [shape: f32[32,128], index: 8, kind: input, shape index: {}]
  %s9 = inlined_call_operand.vmem [shape: f32[1,128], index: 9, kind: input, shape index: {}]
  %s10 = inlined_call_operand.vmem [shape: f32[128,32], index: 10, kind: input, shape index: {}]
  %s11 = inlined_call_operand.vmem [shape: f32[1,32], index: 11, kind: input, shape index: {}]
  %s12 = inlined_call_operand.hbm [shape: f32[16,32], index: 12, kind: output, shape index: {}]
  %s13 = sld [smem:[#allocation0]]
  $region81: #{tpu_custom_call.1} parent=0
    _
  %s15 = ssub.s32 1, %s13
  %s16 = scalar_select 0, %s15, %s13
  $region1: #{tpu_custom_call.1} parent=0
    #allocation2 [shape = 'u8[8192]{0}', space=vmem, size = 0x2000, scoped, tag = 'output window, operand 0']
    #allocation3 [shape = 's32[2]{0}', space=sflag, size = 0x8, scoped, tag = 'scoped memory for tpu_custom_call.1']
    %17 = vsyncpa [#allocation3], 0
    %s18 = scalar_lea.sflag [#allocation3], 1
    %19 = vsyncpa %s18, 0
    loop: start=0, step=1, limit=4
    $region2: #{tpu_custom_call.1} parent=1 // loop_pre_header
      _
    $region3: #{tpu_custom_call.1} parent=1 // loop_header
      %s21 = sphi 0, %s25
      %p22 = scmp.ge.s32.totalorder %s21, 4
      %s31 = sphi 0, %s33
      %s34 = sphi 0, %s31
      %s35 = sphi 0, %s34
      %s51 = sphi 0, %s35
      %s55 = sphi 0, %s55
      %s57 = sphi 0, %s55
      %s58 = sphi 0, %s57
      %s72 = sphi 0, %s58
      %s76 = sphi 0, %s76
      %s78 = sphi 0, %s76
      %s79 = sphi 0, %s78
      %s93 = sphi 0, %s79
      %s97 = sphi 0, %s97
      %s99 = sphi 0, %s97
      %s100 = sphi 0, %s99
      %s114 = sphi 0, %s100
      %s118 = sphi 0, %s118
      %s120 = sphi 0, %s118
      %s121 = sphi 0, %s120
      %s135 = sphi 0, %s121
      %s139 = sphi 0, %s139
      %s141 = sphi 0, %s139
      %s142 = sphi 0, %s141
      %s156 = sphi 0, %s142
      %s160 = sphi 0, %s160
      %s162 = sphi 0, %s160
      %s163 = sphi 0, %s162
      %s177 = sphi 0, %s163
      %s181 = sphi 0, %s181
      %s183 = sphi 0, %s181
      %s184 = sphi 0, %s183
      %s198 = sphi 0, %s184
      %s202 = sphi 0, %s202
      %s204 = sphi 0, %s202
      %s205 = sphi 0, %s204
      %s219 = sphi 0, %s205
      %s223 = sphi 0, %s223
      %s225 = sphi 0, %s223
      %s226 = sphi 0, %s225
      %s240 = sphi 0, %s226
      %s244 = sphi 0, %s244
      %s246 = sphi 0, %s244
      %s247 = sphi 0, %s246
      %s261 = sphi 0, %s247
      %s265 = sphi 0, %s265
      %s267 = sphi 0, %s265
      %s268 = sphi 0, %s267
      %s282 = sphi 0, %s268
      %s288 = sphi 0, %s290
      %s291 = sphi 0, %s288
      %s292 = sphi 0, %s291
      %s308 = sphi 0, %s292
    $region4: #{tpu_custom_call.1} parent=1 // loop_header_branch
      %24 = sbr.rel (%p22) target = $region8
    $region5: #{tpu_custom_call.1} parent=1 // loop_body
      %s26 = ssub.s32 %s21, 1
      %s27 = ssub.s32 %s21, 2
      %s28 = sadd.s32 %s21, 1
      %s29 = ssub.s32 %s21, %s28
      %p30 = scmp.eq.s32.totalorder %s29, 0
      %s32 = sadd.s32 %s31, 1
      %s33 = scalar_select %p30, %s31, %s32
      %p36 = pneg %p30
      %p37 = scmp.eq.s32.totalorder %s21, 1
      %p38 = por %p36, %p37
      %p39 = scmp.ne.s32.totalorder %s31, %s34
      %p40 = scmp.eq.s32.totalorder %s21, 0
      %p41 = por %p39, %p40
      %p42 = scmp.ne.s32.totalorder %s31, %s34
      %p43 = scmp.eq.s32.totalorder %s26, 1
      %p44 = por %p42, %p43
      %p45 = scmp.ne.s32.totalorder %s34, %s35
      %p46 = scmp.eq.s32.totalorder %s26, 0
      %p47 = por %p45, %p46
      %p48 = scmp.ne.s32.totalorder %s34, %s35
      %p49 = scmp.eq.s32.totalorder %s27, 1
      %p50 = por %p48, %p49
      %p52 = scmp.ne.s32.totalorder %s35, %s51
      %p53 = scmp.eq.s32.totalorder %s27, 0
      %p54 = por %p52, %p53
      %s56 = sadd.s32 %s55, 1
      %p59 = scmp.eq.s32.totalorder %s21, 1
      %p60 = scmp.ne.s32.totalorder %s55, %s57
      %p61 = scmp.eq.s32.totalorder %s21, 0
      %p62 = por %p60, %p61
      %p63 = scmp.ne.s32.totalorder %s55, %s57
      %p64 = scmp.eq.s32.totalorder %s26, 1
      %p65 = por %p63, %p64
      %p66 = scmp.ne.s32.totalorder %s57, %s58
      %p67 = scmp.eq.s32.totalorder %s26, 0
      %p68 = por %p66, %p67
      %p69 = scmp.ne.s32.totalorder %s57, %s58
      %p70 = scmp.eq.s32.totalorder %s27, 1
      %p71 = por %p69, %p70
      %p73 = scmp.ne.s32.totalorder %s58, %s72
      %p74 = scmp.eq.s32.totalorder %s27, 0
      %p75 = por %p73, %p74
      %s77 = sadd.s32 %s76, 1
      %p80 = scmp.eq.s32.totalorder %s21, 1
      %p81 = scmp.ne.s32.totalorder %s76, %s78
      %p82 = scmp.eq.s32.totalorder %s21, 0
      %p83 = por %p81, %p82
      %p84 = scmp.ne.s32.totalorder %s76, %s78
      %p85 = scmp.eq.s32.totalorder %s26, 1
      %p86 = por %p84, %p85
      %p87 = scmp.ne.s32.totalorder %s78, %s79
      %p88 = scmp.eq.s32.totalorder %s26, 0
      %p89 = por %p87, %p88
      %p90 = scmp.ne.s32.totalorder %s78, %s79
      %p91 = scmp.eq.s32.totalorder %s27, 1
      %p92 = por %p90, %p91
      %p94 = scmp.ne.s32.totalorder %s79, %s93
      %p95 = scmp.eq.s32.totalorder %s27, 0
      %p96 = por %p94, %p95
      %s98 = sadd.s32 %s97, 1
      %p101 = scmp.eq.s32.totalorder %s21, 1
      %p102 = scmp.ne.s32.totalorder %s97, %s99
      %p103 = scmp.eq.s32.totalorder %s21, 0
      %p104 = por %p102, %p103
      %p105 = scmp.ne.s32.totalorder %s97, %s99
      %p106 = scmp.eq.s32.totalorder %s26, 1
      %p107 = por %p105, %p106
      %p108 = scmp.ne.s32.totalorder %s99, %s100
      %p109 = scmp.eq.s32.totalorder %s26, 0
      %p110 = por %p108, %p109
      %p111 = scmp.ne.s32.totalorder %s99, %s100
      %p112 = scmp.eq.s32.totalorder %s27, 1
      %p113 = por %p111, %p112
      %p115 = scmp.ne.s32.totalorder %s100, %s114
      %p116 = scmp.eq.s32.totalorder %s27, 0
      %p117 = por %p115, %p116
      %s119 = sadd.s32 %s118, 1
      %p122 = scmp.eq.s32.totalorder %s21, 1
      %p123 = scmp.ne.s32.totalorder %s118, %s120
      %p124 = scmp.eq.s32.totalorder %s21, 0
      %p125 = por %p123, %p124
      %p126 = scmp.ne.s32.totalorder %s118, %s120
      %p127 = scmp.eq.s32.totalorder %s26, 1
      %p128 = por %p126, %p127
      %p129 = scmp.ne.s32.totalorder %s120, %s121
      %p130 = scmp.eq.s32.totalorder %s26, 0
      %p131 = por %p129, %p130
      %p132 = scmp.ne.s32.totalorder %s120, %s121
      %p133 = scmp.eq.s32.totalorder %s27, 1
      %p134 = por %p132, %p133
      %p136 = scmp.ne.s32.totalorder %s121, %s135
      %p137 = scmp.eq.s32.totalorder %s27, 0
      %p138 = por %p136, %p137
      %s140 = sadd.s32 %s139, 1
      %p143 = scmp.eq.s32.totalorder %s21, 1
      %p144 = scmp.ne.s32.totalorder %s139, %s141
      %p145 = scmp.eq.s32.totalorder %s21, 0
      %p146 = por %p144, %p145
      %p147 = scmp.ne.s32.totalorder %s139, %s141
      %p148 = scmp.eq.s32.totalorder %s26, 1
      %p149 = por %p147, %p148
      %p150 = scmp.ne.s32.totalorder %s141, %s142
      %p151 = scmp.eq.s32.totalorder %s26, 0
      %p152 = por %p150, %p151
      %p153 = scmp.ne.s32.totalorder %s141, %s142
      %p154 = scmp.eq.s32.totalorder %s27, 1
      %p155 = por %p153, %p154
      %p157 = scmp.ne.s32.totalorder %s142, %s156
      %p158 = scmp.eq.s32.totalorder %s27, 0
      %p159 = por %p157, %p158
      %s161 = sadd.s32 %s160, 1
      %p164 = scmp.eq.s32.totalorder %s21, 1
      %p165 = scmp.ne.s32.totalorder %s160, %s162
      %p166 = scmp.eq.s32.totalorder %s21, 0
      %p167 = por %p165, %p166
      %p168 = scmp.ne.s32.totalorder %s160, %s162
      %p169 = scmp.eq.s32.totalorder %s26, 1
      %p170 = por %p168, %p169
      %p171 = scmp.ne.s32.totalorder %s162, %s163
      %p172 = scmp.eq.s32.totalorder %s26, 0
      %p173 = por %p171, %p172
      %p174 = scmp.ne.s32.totalorder %s162, %s163
      %p175 = scmp.eq.s32.totalorder %s27, 1
      %p176 = por %p174, %p175
      %p178 = scmp.ne.s32.totalorder %s163, %s177
      %p179 = scmp.eq.s32.totalorder %s27, 0
      %p180 = por %p178, %p179
      %s182 = sadd.s32 %s181, 1
      %p185 = scmp.eq.s32.totalorder %s21, 1
      %p186 = scmp.ne.s32.totalorder %s181, %s183
      %p187 = scmp.eq.s32.totalorder %s21, 0
      %p188 = por %p186, %p187
      %p189 = scmp.ne.s32.totalorder %s181, %s183
      %p190 = scmp.eq.s32.totalorder %s26, 1
      %p191 = por %p189, %p190
      %p192 = scmp.ne.s32.totalorder %s183, %s184
      %p193 = scmp.eq.s32.totalorder %s26, 0
      %p194 = por %p192, %p193
      %p195 = scmp.ne.s32.totalorder %s183, %s184
      %p196 = scmp.eq.s32.totalorder %s27, 1
      %p197 = por %p195, %p196
      %p199 = scmp.ne.s32.totalorder %s184, %s198
      %p200 = scmp.eq.s32.totalorder %s27, 0
      %p201 = por %p199, %p200
      %s203 = sadd.s32 %s202, 1
      %p206 = scmp.eq.s32.totalorder %s21, 1
      %p207 = scmp.ne.s32.totalorder %s202, %s204
      %p208 = scmp.eq.s32.totalorder %s21, 0
      %p209 = por %p207, %p208
      %p210 = scmp.ne.s32.totalorder %s202, %s204
      %p211 = scmp.eq.s32.totalorder %s26, 1
      %p212 = por %p210, %p211
      %p213 = scmp.ne.s32.totalorder %s204, %s205
      %p214 = scmp.eq.s32.totalorder %s26, 0
      %p215 = por %p213, %p214
      %p216 = scmp.ne.s32.totalorder %s204, %s205
      %p217 = scmp.eq.s32.totalorder %s27, 1
      %p218 = por %p216, %p217
      %p220 = scmp.ne.s32.totalorder %s205, %s219
      %p221 = scmp.eq.s32.totalorder %s27, 0
      %p222 = por %p220, %p221
      %s224 = sadd.s32 %s223, 1
      %p227 = scmp.eq.s32.totalorder %s21, 1
      %p228 = scmp.ne.s32.totalorder %s223, %s225
      %p229 = scmp.eq.s32.totalorder %s21, 0
      %p230 = por %p228, %p229
      %p231 = scmp.ne.s32.totalorder %s223, %s225
      %p232 = scmp.eq.s32.totalorder %s26, 1
      %p233 = por %p231, %p232
      %p234 = scmp.ne.s32.totalorder %s225, %s226
      %p235 = scmp.eq.s32.totalorder %s26, 0
      %p236 = por %p234, %p235
      %p237 = scmp.ne.s32.totalorder %s225, %s226
      %p238 = scmp.eq.s32.totalorder %s27, 1
      %p239 = por %p237, %p238
      %p241 = scmp.ne.s32.totalorder %s226, %s240
      %p242 = scmp.eq.s32.totalorder %s27, 0
      %p243 = por %p241, %p242
      %s245 = sadd.s32 %s244, 1
      %p248 = scmp.eq.s32.totalorder %s21, 1
      %p249 = scmp.ne.s32.totalorder %s244, %s246
      %p250 = scmp.eq.s32.totalorder %s21, 0
      %p251 = por %p249, %p250
      %p252 = scmp.ne.s32.totalorder %s244, %s246
      %p253 = scmp.eq.s32.totalorder %s26, 1
      %p254 = por %p252, %p253
      %p255 = scmp.ne.s32.totalorder %s246, %s247
      %p256 = scmp.eq.s32.totalorder %s26, 0
      %p257 = por %p255, %p256
      %p258 = scmp.ne.s32.totalorder %s246, %s247
      %p259 = scmp.eq.s32.totalorder %s27, 1
      %p260 = por %p258, %p259
      %p262 = scmp.ne.s32.totalorder %s247, %s261
      %p263 = scmp.eq.s32.totalorder %s27, 0
      %p264 = por %p262, %p263
      %s266 = sadd.s32 %s265, 1
      %p269 = scmp.eq.s32.totalorder %s21, 1
      %p270 = scmp.ne.s32.totalorder %s265, %s267
      %p271 = scmp.eq.s32.totalorder %s21, 0
      %p272 = por %p270, %p271
      %p273 = scmp.ne.s32.totalorder %s265, %s267
      %p274 = scmp.eq.s32.totalorder %s26, 1
      %p275 = por %p273, %p274
      %p276 = scmp.ne.s32.totalorder %s267, %s268
      %p277 = scmp.eq.s32.totalorder %s26, 0
      %p278 = por %p276, %p277
      %p279 = scmp.ne.s32.totalorder %s267, %s268
      %p280 = scmp.eq.s32.totalorder %s27, 1
      %p281 = por %p279, %p280
      %p283 = scmp.ne.s32.totalorder %s268, %s282
      %p284 = scmp.eq.s32.totalorder %s27, 0
      %p285 = por %p283, %p284
      %s286 = ssub.s32 %s21, %s28
      %p287 = scmp.eq.s32.totalorder %s286, 0
      %s289 = sadd.s32 %s288, 1
      %s290 = scalar_select %p287, %s288, %s289
      %p293 = pneg %p287
      %p294 = scmp.eq.s32.totalorder %s21, 1
      %p295 = por %p293, %p294
      %p296 = scmp.ne.s32.totalorder %s288, %s291
      %p297 = scmp.eq.s32.totalorder %s21, 0
      %p298 = por %p296, %p297
      %p299 = scmp.ne.s32.totalorder %s288, %s291
      %p300 = scmp.eq.s32.totalorder %s26, 1
      %p301 = por %p299, %p300
      %p302 = scmp.ne.s32.totalorder %s291, %s292
      %p303 = scmp.eq.s32.totalorder %s26, 0
      %p304 = por %p302, %p303
      %p305 = scmp.ne.s32.totalorder %s291, %s292
      %p306 = scmp.eq.s32.totalorder %s27, 1
      %p307 = por %p305, %p306
      %p309 = scmp.ne.s32.totalorder %s292, %s308
      %p310 = scmp.eq.s32.totalorder %s27, 0
      %p311 = por %p309, %p310
      %p312 = scmp.le.s32.totalorder 1, %s21
      %p313 = scmp.lt.s32.totalorder %s21, 3
      %p314 = pnand %p312, %p313
      %p315 = pneg %p314
      // Predicated region
      $region9: #{tpu_custom_call.1} parent=5 // pred_check
        _
      $region10: #{tpu_custom_call.1} parent=5 // pred_check_branch
        %317 = sbr.rel (%p314) target = $region12
      $region11: #{tpu_custom_call.1} parent=5 // pred_region
        %s318 = ssub.s32 %s21, 1
        // Predicated region
        $region13: #{tpu_custom_call.1} parent=11 // pred_check
          %p319 = pneg %p68
        $region14: #{tpu_custom_call.1} parent=11 // pred_check_branch
          %321 = sbr.rel (%p319) target = $region16
        $region15: #{tpu_custom_call.1} parent=11 // pred_region
          _
        $region16: #{tpu_custom_call.1} parent=11 // pred_fallthru
          _
        // Predicated region
        $region17: #{tpu_custom_call.1} parent=11 // pred_check
          %p322 = pneg %p89
        $region18: #{tpu_custom_call.1} parent=11 // pred_check_branch
          %324 = sbr.rel (%p322) target = $region20
        $region19: #{tpu_custom_call.1} parent=11 // pred_region
          _
        $region20: #{tpu_custom_call.1} parent=11 // pred_fallthru
          _
        // Predicated region
        $region21: #{tpu_custom_call.1} parent=11 // pred_check
          %p325 = pneg %p110
        $region22: #{tpu_custom_call.1} parent=11 // pred_check_branch
          %327 = sbr.rel (%p325) target = $region24
        $region23: #{tpu_custom_call.1} parent=11 // pred_region
          _
        $region24: #{tpu_custom_call.1} parent=11 // pred_fallthru
          _
        // Predicated region
        $region25: #{tpu_custom_call.1} parent=11 // pred_check
          %p328 = pneg %p131
        $region26: #{tpu_custom_call.1} parent=11 // pred_check_branch
          %330 = sbr.rel (%p328) target = $region28
        $region27: #{tpu_custom_call.1} parent=11 // pred_region
          _
        $region28: #{tpu_custom_call.1} parent=11 // pred_fallthru
          _
        // Predicated region
        $region29: #{tpu_custom_call.1} parent=11 // pred_check
          %p331 = pneg %p152
        $region30: #{tpu_custom_call.1} parent=11 // pred_check_branch
          %333 = sbr.rel (%p331) target = $region32
        $region31: #{tpu_custom_call.1} parent=11 // pred_region
          _
        $region32: #{tpu_custom_call.1} parent=11 // pred_fallthru
          _
        // Predicated region
        $region33: #{tpu_custom_call.1} parent=11 // pred_check
          %p334 = pneg %p173
        $region34: #{tpu_custom_call.1} parent=11 // pred_check_branch
          %336 = sbr.rel (%p334) target = $region36
        $region35: #{tpu_custom_call.1} parent=11 // pred_region
          _
        $region36: #{tpu_custom_call.1} parent=11 // pred_fallthru
          _
        // Predicated region
        $region37: #{tpu_custom_call.1} parent=11 // pred_check
          %p337 = pneg %p194
        $region38: #{tpu_custom_call.1} parent=11 // pred_check_branch
          %339 = sbr.rel (%p337) target = $region40
        $region39: #{tpu_custom_call.1} parent=11 // pred_region
          _
        $region40: #{tpu_custom_call.1} parent=11 // pred_fallthru
          _
        // Predicated region
        $region41: #{tpu_custom_call.1} parent=11 // pred_check
          %p340 = pneg %p215
        $region42: #{tpu_custom_call.1} parent=11 // pred_check_branch
          %342 = sbr.rel (%p340) target = $region44
        $region43: #{tpu_custom_call.1} parent=11 // pred_region
          _
        $region44: #{tpu_custom_call.1} parent=11 // pred_fallthru
          _
        // Predicated region
        $region45: #{tpu_custom_call.1} parent=11 // pred_check
          %p343 = pneg %p236
        $region46: #{tpu_custom_call.1} parent=11 // pred_check_branch
          %345 = sbr.rel (%p343) target = $region48
        $region47: #{tpu_custom_call.1} parent=11 // pred_region
          _
        $region48: #{tpu_custom_call.1} parent=11 // pred_fallthru
          _
        // Predicated region
        $region49: #{tpu_custom_call.1} parent=11 // pred_check
          %p346 = pneg %p257
        $region50: #{tpu_custom_call.1} parent=11 // pred_check_branch
          %348 = sbr.rel (%p346) target = $region52
        $region51: #{tpu_custom_call.1} parent=11 // pred_region
          _
        $region52: #{tpu_custom_call.1} parent=11 // pred_fallthru
          _
        // Predicated region
        $region53: #{tpu_custom_call.1} parent=11 // pred_check
          %p349 = pneg %p278
        $region54: #{tpu_custom_call.1} parent=11 // pred_check_branch
          %351 = sbr.rel (%p349) target = $region56
        $region55: #{tpu_custom_call.1} parent=11 // pred_region
          _
        $region56: #{tpu_custom_call.1} parent=11 // pred_fallthru
          _
      $region12: #{tpu_custom_call.1} parent=5 // pred_fallthru
        _
      %p352 = scmp.lt.s32.totalorder %s21, 2
      // Predicated region
      $region57: #{tpu_custom_call.1} parent=5 // pred_check
        %p353 = pneg %p352
      $region58: #{tpu_custom_call.1} parent=5 // pred_check_branch
        %355 = sbr.rel (%p353) target = $region60
      $region59: #{tpu_custom_call.1} parent=5 // pred_region
        // Predicated region
        $region61: #{tpu_custom_call.1} parent=59 // pred_check
          %p356 = pneg %p41
        $region62: #{tpu_custom_call.1} parent=59 // pred_check_branch
          %358 = sbr.rel (%p356) target = $region64
        $region63: #{tpu_custom_call.1} parent=59 // pred_region
          %p359 = scmp.lt.s32.totalorder %s21, 1
          %s360 = scalar_select %p359, %s21, 1
          %s361 = smul.addr %s360, 8
          %s362 = scalar_lea.vmem %s0, %s361
        $region64: #{tpu_custom_call.1} parent=59 // pred_fallthru
          _
      $region60: #{tpu_custom_call.1} parent=5 // pred_fallthru
        _
      %p363 = scmp.le.s32.totalorder 1, %s21
      %p364 = scmp.lt.s32.totalorder %s21, 3
      %p365 = pnand %p363, %p364
      %p366 = pneg %p365
      // Predicated region
      $region65: #{tpu_custom_call.1} parent=5 // pred_check
        _
      $region66: #{tpu_custom_call.1} parent=5 // pred_check_branch
        %368 = sbr.rel (%p365) target = $region68
      $region67: #{tpu_custom_call.1} parent=5 // pred_region
        %s369 = ssub.s32 %s21, 1
        %p370 = scmp.lt.s32.totalorder %s26, 1
        %s371 = scalar_select %p370, %s26, 1
        %s372 = smul.addr %s371, 8
        %s373 = scalar_lea.vmem %s0, %s372
        %p374 = pneg %p47
        %p375 = pneg %p44
        %p376 = pneg %p68
        %p377 = pneg %p65
        %p378 = pneg %p89
        %p379 = pneg %p86
        %p380 = pneg %p110
        %p381 = pneg %p107
        %p382 = pneg %p131
        %p383 = pneg %p128
        %p384 = pneg %p152
        %p385 = pneg %p149
        %p386 = pneg %p173
        %p387 = pneg %p170
        %p388 = pneg %p194
        %p389 = pneg %p191
        %p390 = pneg %p215
        %p391 = pneg %p212
        %p392 = pneg %p236
        %p393 = pneg %p233
        %p394 = pneg %p257
        %p395 = pneg %p254
        %p396 = pneg %p278
        %p397 = pneg %p275
        %p398 = pneg %p304
        %p399 = pneg %p301
        %s400 = sand.u32 %s291, 1
        %s401 = scalar_lea.sflag [#allocation3], %s400
        %s402 = sand.u32 %s291, 1
        %s403 = smul.addr %s402, 8
        %s404 = scalar_lea.vmem [#allocation2], %s403
        %p405 = scmp.lt.s32.totalorder %s26, 1
        %s406 = scalar_select %p405, %s26, 1
        %s407 = smul.addr %s406, 8
        %s408 = scalar_lea.vmem %s0, %s407
        %v409 = vld [vmem:[%s408] sm:$0xff]
        %v410 = vld [vmem:[%s1] sm:$0x1]
        %v411 = vld [vmem:[%s2] sm:$0x1]
        %vm412 = vcmask 261120
        %v413 = vsel %vm412, %v409, 0.0
        %414 = vadd.xlane.f32.xlu0 %v413
        %v415 = vpop.xlane.xlu0 %414
        %v416 = vrcp.pop 32.0
        %v417 = vmul.f32 %v415, %v416
        %v418 = vsub.f32 %v409, %v417
        %v419 = vmul.f32 %v418, %v418
        %v420 = vsel %vm412, %v419, 0.0
        %421 = vadd.xlane.f32.xlu0 %v420
        %v422 = vpop.xlane.xlu0 %421
        %v423 = vmul.f32 %v422, %v416
        %v424 = vadd.f32 %v423, 1e-05
        %v425 = vrsqrt.pop %v424
        %v426 = vmul.f32 %v418, %v425
        %v428 = vlaneseq
        %v429 = vshrl.u32 %v428, 7
        %v430 = vsub.s32 0, %v429
        %v431 = vrot.slane %v410, %v430
        %v433 = vmul.f32 %v426, %v431
        %v435 = vlaneseq
        %v436 = vshrl.u32 %v435, 7
        %v437 = vsub.s32 0, %v436
        %v438 = vrot.slane %v411, %v437
        %v440 = vadd.f32 %v433, %v438
        %v441 = vld [vmem:[%s3] sm:$0xff]
        %v442 = vld [vmem:[%s3 + $0x8] sm:$0xff]
        %v443 = vld [vmem:[%s3 + $0x10] sm:$0xff]
        %v444 = vld [vmem:[%s3 + $0x18] sm:$0xff]
        %v445 = vld [vmem:[%s3 + $0x20] sm:$0xff]
        %v446 = vld [vmem:[%s3 + $0x28] sm:$0xff]
        %v447 = vld [vmem:[%s3 + $0x30] sm:$0xff]
        %v448 = vld [vmem:[%s3 + $0x38] sm:$0xff]
        %v449 = vld [vmem:[%s3 + $0x40] sm:$0xff]
        %v450 = vld [vmem:[%s3 + $0x48] sm:$0xff]
        %v451 = vld [vmem:[%s3 + $0x50] sm:$0xff]
        %v452 = vld [vmem:[%s3 + $0x58] sm:$0xff]
        %v453 = vld [vmem:[%s3 + $0x60] sm:$0xff]
        %v454 = vld [vmem:[%s3 + $0x68] sm:$0xff]
        %v455 = vld [vmem:[%s3 + $0x70] sm:$0xff]
        %v456 = vld [vmem:[%s3 + $0x78] sm:$0xff]
        %v457 = vld [vmem:[%s3 + $0x80] sm:$0xff]
        %v458 = vld [vmem:[%s3 + $0x88] sm:$0xff]
        %v459 = vld [vmem:[%s3 + $0x90] sm:$0xff]
        %v460 = vld [vmem:[%s3 + $0x98] sm:$0xff]
        %v461 = vld [vmem:[%s3 + $0xa0] sm:$0xff]
        %v462 = vld [vmem:[%s3 + $0xa8] sm:$0xff]
        %v463 = vld [vmem:[%s3 + $0xb0] sm:$0xff]
        %v464 = vld [vmem:[%s3 + $0xb8] sm:$0xff]
        %v465 = vld [vmem:[%s3 + $0xc0] sm:$0xff]
        %v466 = vld [vmem:[%s3 + $0xc8] sm:$0xff]
        %v467 = vld [vmem:[%s3 + $0xd0] sm:$0xff]
        %v468 = vld [vmem:[%s3 + $0xd8] sm:$0xff]
        %v469 = vld [vmem:[%s3 + $0xe0] sm:$0xff]
        %v470 = vld [vmem:[%s3 + $0xe8] sm:$0xff]
        %v471 = vld [vmem:[%s3 + $0xf0] sm:$0xff]
        %v472 = vld [vmem:[%s3 + $0xf8] sm:$0xff]
        %v473 = vld [vmem:[%s3 + $0x100] sm:$0xff]
        %v474 = vld [vmem:[%s3 + $0x108] sm:$0xff]
        %v475 = vld [vmem:[%s3 + $0x110] sm:$0xff]
        %v476 = vld [vmem:[%s3 + $0x118] sm:$0xff]
        %v477 = vld [vmem:[%s3 + $0x120] sm:$0xff]
        %v478 = vld [vmem:[%s3 + $0x128] sm:$0xff]
        %v479 = vld [vmem:[%s3 + $0x130] sm:$0xff]
        %v480 = vld [vmem:[%s3 + $0x138] sm:$0xff]
        %v481 = vld [vmem:[%s3 + $0x140] sm:$0xff]
        %v482 = vld [vmem:[%s3 + $0x148] sm:$0xff]
        %v483 = vld [vmem:[%s3 + $0x150] sm:$0xff]
        %v484 = vld [vmem:[%s3 + $0x158] sm:$0xff]
        %v485 = vld [vmem:[%s3 + $0x160] sm:$0xff]
        %v486 = vld [vmem:[%s3 + $0x168] sm:$0xff]
        %v487 = vld [vmem:[%s3 + $0x170] sm:$0xff]
        %v488 = vld [vmem:[%s3 + $0x178] sm:$0xff]
        %v490 = vsel %vm412, %v440, 0
        %492 = vmatprep.subr.mxu0 0.0
        %493 = vmatpush1.msra.mxu0 %v441
        %494 = vmatprep.subr.mxu0 0.0
        %495 = vmatpush1.msra.mxu0 %v442
        %496 = vmatprep.subr.mxu0 0.0
        %497 = vmatpush1.msra.mxu0 %v443
        %498 = vmatprep.subr.mxu0 0.0
        %499 = vmatpush1.msra.mxu0 %v444
        %500 = vmatprep.subr.mxu0 0.0
        %501 = vmatpush1.msra.mxu0 0.0
        %502 = vmatprep.subr.mxu0 0.0
        %503 = vmatpush1.msra.mxu0 0.0
        %504 = vmatprep.subr.mxu0 0.0
        %505 = vmatpush1.msra.mxu0 0.0
        %506 = vmatprep.subr.mxu0 0.0
        %507 = vmatpush1.msra.mxu0 0.0
        %508 = vmatprep.subr.mxu0 0.0
        %509 = vmatpush1.msra.mxu0 0.0
        %510 = vmatprep.subr.mxu0 0.0
        %511 = vmatpush1.msra.mxu0 0.0
        %512 = vmatprep.subr.mxu0 0.0
        %513 = vmatpush1.msra.mxu0 0.0
        %514 = vmatprep.subr.mxu0 0.0
        %515 = vmatpush1.msra.mxu0 0.0
        %516 = vmatprep.subr.mxu0 0.0
        %517 = vmatpush1.msra.mxu0 0.0
        %518 = vmatprep.subr.mxu0 0.0
        %519 = vmatpush1.msra.mxu0 0.0
        %520 = vmatprep.subr.mxu0 0.0
        %521 = vmatpush1.msra.mxu0 0.0
        %522 = vmatprep.subr.mxu0 0.0
        %523 = vmatpush1.msra.mxu0 0.0
        %524 = vmatprep.subr.mxu0 0.0
        %525 = vmatpush1.msra.mxu0 0.0
        %526 = vmatprep.subr.mxu0 0.0
        %527 = vmatpush1.msra.mxu0 0.0
        %528 = vmatprep.subr.mxu0 0.0
        %529 = vmatpush1.msra.mxu0 0.0
        %530 = vmatprep.subr.mxu0 0.0
        %531 = vmatpush1.msra.mxu0 0.0
        %532 = vmatprep.subr.mxu0 0.0
        %533 = vmatpush1.msra.mxu0 0.0
        %534 = vmatprep.subr.mxu0 0.0
        %535 = vmatpush1.msra.mxu0 0.0
        %536 = vmatprep.subr.mxu0 0.0
        %537 = vmatpush1.msra.mxu0 0.0
        %538 = vmatprep.subr.mxu0 0.0
        %539 = vmatpush1.msra.mxu0 0.0
        %540 = vmatprep.subr.mxu0 0.0
        %541 = vmatpush1.msra.mxu0 0.0
        %542 = vmatprep.subr.mxu0 0.0
        %543 = vmatpush1.msra.mxu0 0.0
        %544 = vmatprep.subr.mxu0 0.0
        %545 = vmatpush1.msra.mxu0 0.0
        %546 = vmatprep.subr.mxu0 0.0
        %547 = vmatpush1.msra.mxu0 0.0
        %548 = vmatprep.subr.mxu0 0.0
        %549 = vmatpush1.msra.mxu0 0.0
        %550 = vmatprep.subr.mxu0 0.0
        %551 = vmatpush1.msra.mxu0 0.0
        %552 = vmatprep.subr.mxu0 0.0
        %553 = vmatpush1.msra.mxu0 0.0
        %554 = vmatprep.subr.mxu0 0.0
        %555 = vmatpush1.msra.mxu0 0.0
        %556 = vmatprep.mubr.f32.mxu0 0.0
        %557 = vmatmul.mubr.f32.gmra.mrb[0].mxu0 %v490
        %v558 = vpop.f32.mrb[0].mxu0
        %v559 = vadd.f32 0.0, %v558
        %v560 = vpop.f32.mrb[0].mxu0
        %561 = vdwg.mxu0
        %562 = vmatprep.subr.mxu0 0.0
        %563 = vmatpush1.msra.mxu0 %v445
        %564 = vmatprep.subr.mxu0 0.0
        %565 = vmatpush1.msra.mxu0 %v446
        %566 = vmatprep.subr.mxu0 0.0
        %567 = vmatpush1.msra.mxu0 %v447
        %568 = vmatprep.subr.mxu0 0.0
        %569 = vmatpush1.msra.mxu0 %v448
        %570 = vmatprep.subr.mxu0 0.0
        %571 = vmatpush1.msra.mxu0 0.0
        %572 = vmatprep.subr.mxu0 0.0
        %573 = vmatpush1.msra.mxu0 0.0
        %574 = vmatprep.subr.mxu0 0.0
        %575 = vmatpush1.msra.mxu0 0.0
        %576 = vmatprep.subr.mxu0 0.0
        %577 = vmatpush1.msra.mxu0 0.0
        %578 = vmatprep.subr.mxu0 0.0
        %579 = vmatpush1.msra.mxu0 0.0
        %580 = vmatprep.subr.mxu0 0.0
        %581 = vmatpush1.msra.mxu0 0.0
        %582 = vmatprep.subr.mxu0 0.0
        %583 = vmatpush1.msra.mxu0 0.0
        %584 = vmatprep.subr.mxu0 0.0
        %585 = vmatpush1.msra.mxu0 0.0
        %586 = vmatprep.subr.mxu0 0.0
        %587 = vmatpush1.msra.mxu0 0.0
        %588 = vmatprep.subr.mxu0 0.0
        %589 = vmatpush1.msra.mxu0 0.0
        %590 = vmatprep.subr.mxu0 0.0
        %591 = vmatpush1.msra.mxu0 0.0
        %592 = vmatprep.subr.mxu0 0.0
        %593 = vmatpush1.msra.mxu0 0.0
        %594 = vmatprep.subr.mxu0 0.0
        %595 = vmatpush1.msra.mxu0 0.0
        %596 = vmatprep.subr.mxu0 0.0
        %597 = vmatpush1.msra.mxu0 0.0
        %598 = vmatprep.subr.mxu0 0.0
        %599 = vmatpush1.msra.mxu0 0.0
        %600 = vmatprep.subr.mxu0 0.0
        %601 = vmatpush1.msra.mxu0 0.0
        %602 = vmatprep.subr.mxu0 0.0
        %603 = vmatpush1.msra.mxu0 0.0
        %604 = vmatprep.subr.mxu0 0.0
        %605 = vmatpush1.msra.mxu0 0.0
        %606 = vmatprep.subr.mxu0 0.0
        %607 = vmatpush1.msra.mxu0 0.0
        %608 = vmatprep.subr.mxu0 0.0
        %609 = vmatpush1.msra.mxu0 0.0
        %610 = vmatprep.subr.mxu0 0.0
        %611 = vmatpush1.msra.mxu0 0.0
        %612 = vmatprep.subr.mxu0 0.0
        %613 = vmatpush1.msra.mxu0 0.0
        %614 = vmatprep.subr.mxu0 0.0
        %615 = vmatpush1.msra.mxu0 0.0
        %616 = vmatprep.subr.mxu0 0.0
        %617 = vmatpush1.msra.mxu0 0.0
        %618 = vmatprep.subr.mxu0 0.0
        %619 = vmatpush1.msra.mxu0 0.0
        %620 = vmatprep.subr.mxu0 0.0
        %621 = vmatpush1.msra.mxu0 0.0
        %622 = vmatprep.subr.mxu0 0.0
        %623 = vmatpush1.msra.mxu0 0.0
        %624 = vmatprep.subr.mxu0 0.0
        %625 = vmatpush1.msra.mxu0 0.0
        %626 = vmatprep.mubr.f32.mxu0 0.0
        %627 = vmatmul.mubr.f32.gmra.mrb[0].mxu0 %v490
        %v628 = vpop.f32.mrb[0].mxu0
        %v629 = vadd.f32 0.0, %v628
        %v630 = vpop.f32.mrb[0].mxu0
        %631 = vdwg.mxu0
        %632 = vmatprep.subr.mxu0 0.0
        %633 = vmatpush1.msra.mxu0 %v449
        %634 = vmatprep.subr.mxu0 0.0
        %635 = vmatpush1.msra.mxu0 %v450
        %636 = vmatprep.subr.mxu0 0.0
        %637 = vmatpush1.msra.mxu0 %v451
        %638 = vmatprep.subr.mxu0 0.0
        %639 = vmatpush1.msra.mxu0 %v452
        %640 = vmatprep.subr.mxu0 0.0
        %641 = vmatpush1.msra.mxu0 0.0
        %642 = vmatprep.subr.mxu0 0.0
        %643 = vmatpush1.msra.mxu0 0.0
        %644 = vmatprep.subr.mxu0 0.0
        %645 = vmatpush1.msra.mxu0 0.0
        %646 = vmatprep.subr.mxu0 0.0
        %647 = vmatpush1.msra.mxu0 0.0
        %648 = vmatprep.subr.mxu0 0.0
        %649 = vmatpush1.msra.mxu0 0.0
        %650 = vmatprep.subr.mxu0 0.0
        %651 = vmatpush1.msra.mxu0 0.0
        %652 = vmatprep.subr.mxu0 0.0
        %653 = vmatpush1.msra.mxu0 0.0
        %654 = vmatprep.subr.mxu0 0.0
        %655 = vmatpush1.msra.mxu0 0.0
        %656 = vmatprep.subr.mxu0 0.0
        %657 = vmatpush1.msra.mxu0 0.0
        %658 = vmatprep.subr.mxu0 0.0
        %659 = vmatpush1.msra.mxu0 0.0
        %660 = vmatprep.subr.mxu0 0.0
        %661 = vmatpush1.msra.mxu0 0.0
        %662 = vmatprep.subr.mxu0 0.0
        %663 = vmatpush1.msra.mxu0 0.0
        %664 = vmatprep.subr.mxu0 0.0
        %665 = vmatpush1.msra.mxu0 0.0
        %666 = vmatprep.subr.mxu0 0.0
        %667 = vmatpush1.msra.mxu0 0.0
        %668 = vmatprep.subr.mxu0 0.0
        %669 = vmatpush1.msra.mxu0 0.0
        %670 = vmatprep.subr.mxu0 0.0
        %671 = vmatpush1.msra.mxu0 0.0
        %672 = vmatprep.subr.mxu0 0.0
        %673 = vmatpush1.msra.mxu0 0.0
        %674 = vmatprep.subr.mxu0 0.0
        %675 = vmatpush1.msra.mxu0 0.0
        %676 = vmatprep.subr.mxu0 0.0
        %677 = vmatpush1.msra.mxu0 0.0
        %678 = vmatprep.subr.mxu0 0.0
        %679 = vmatpush1.msra.mxu0 0.0
        %680 = vmatprep.subr.mxu0 0.0
        %681 = vmatpush1.msra.mxu0 0.0
        %682 = vmatprep.subr.mxu0 0.0
        %683 = vmatpush1.msra.mxu0 0.0
        %684 = vmatprep.subr.mxu0 0.0
        %685 = vmatpush1.msra.mxu0 0.0
        %686 = vmatprep.subr.mxu0 0.0
        %687 = vmatpush1.msra.mxu0 0.0
        %688 = vmatprep.subr.mxu0 0.0
        %689 = vmatpush1.msra.mxu0 0.0
        %690 = vmatprep.subr.mxu0 0.0
        %691 = vmatpush1.msra.mxu0 0.0
        %692 = vmatprep.subr.mxu0 0.0
        %693 = vmatpush1.msra.mxu0 0.0
        %694 = vmatprep.subr.mxu0 0.0
        %695 = vmatpush1.msra.mxu0 0.0
        %696 = vmatprep.mubr.f32.mxu0 0.0
        %697 = vmatmul.mubr.f32.gmra.mrb[0].mxu0 %v490
        %v698 = vpop.f32.mrb[0].mxu0
        %v699 = vadd.f32 0.0, %v698
        %v700 = vpop.f32.mrb[0].mxu0
        %701 = vdwg.mxu0
        %702 = vmatprep.subr.mxu0 0.0
        %703 = vmatpush1.msra.mxu0 %v453
        %704 = vmatprep.subr.mxu0 0.0
        %705 = vmatpush1.msra.mxu0 %v454
        %706 = vmatprep.subr.mxu0 0.0
        %707 = vmatpush1.msra.mxu0 %v455
        %708 = vmatprep.subr.mxu0 0.0
        %709 = vmatpush1.msra.mxu0 %v456
        %710 = vmatprep.subr.mxu0 0.0
        %711 = vmatpush1.msra.mxu0 0.0
        %712 = vmatprep.subr.mxu0 0.0
        %713 = vmatpush1.msra.mxu0 0.0
        %714 = vmatprep.subr.mxu0 0.0
        %715 = vmatpush1.msra.mxu0 0.0
        %716 = vmatprep.subr.mxu0 0.0
        %717 = vmatpush1.msra.mxu0 0.0
        %718 = vmatprep.subr.mxu0 0.0
        %719 = vmatpush1.msra.mxu0 0.0
        %720 = vmatprep.subr.mxu0 0.0
        %721 = vmatpush1.msra.mxu0 0.0
        %722 = vmatprep.subr.mxu0 0.0
        %723 = vmatpush1.msra.mxu0 0.0
        %724 = vmatprep.subr.mxu0 0.0
        %725 = vmatpush1.msra.mxu0 0.0
        %726 = vmatprep.subr.mxu0 0.0
        %727 = vmatpush1.msra.mxu0 0.0
        %728 = vmatprep.subr.mxu0 0.0
        %729 = vmatpush1.msra.mxu0 0.0
        %730 = vmatprep.subr.mxu0 0.0
        %731 = vmatpush1.msra.mxu0 0.0
        %732 = vmatprep.subr.mxu0 0.0
        %733 = vmatpush1.msra.mxu0 0.0
        %734 = vmatprep.subr.mxu0 0.0
        %735 = vmatpush1.msra.mxu0 0.0
        %736 = vmatprep.subr.mxu0 0.0
        %737 = vmatpush1.msra.mxu0 0.0
        %738 = vmatprep.subr.mxu0 0.0
        %739 = vmatpush1.msra.mxu0 0.0
        %740 = vmatprep.subr.mxu0 0.0
        %741 = vmatpush1.msra.mxu0 0.0
        %742 = vmatprep.subr.mxu0 0.0
        %743 = vmatpush1.msra.mxu0 0.0
        %744 = vmatprep.subr.mxu0 0.0
        %745 = vmatpush1.msra.mxu0 0.0
        %746 = vmatprep.subr.mxu0 0.0
        %747 = vmatpush1.msra.mxu0 0.0
        %748 = vmatprep.subr.mxu0 0.0
        %749 = vmatpush1.msra.mxu0 0.0
        %750 = vmatprep.subr.mxu0 0.0
        %751 = vmatpush1.msra.mxu0 0.0
        %752 = vmatprep.subr.mxu0 0.0
        %753 = vmatpush1.msra.mxu0 0.0
        %754 = vmatprep.subr.mxu0 0.0
        %755 = vmatpush1.msra.mxu0 0.0
        %756 = vmatprep.subr.mxu0 0.0
        %757 = vmatpush1.msra.mxu0 0.0
        %758 = vmatprep.subr.mxu0 0.0
        %759 = vmatpush1.msra.mxu0 0.0
        %760 = vmatprep.subr.mxu0 0.0
        %761 = vmatpush1.msra.mxu0 0.0
        %762 = vmatprep.subr.mxu0 0.0
        %763 = vmatpush1.msra.mxu0 0.0
        %764 = vmatprep.subr.mxu0 0.0
        %765 = vmatpush1.msra.mxu0 0.0
        %766 = vmatprep.mubr.f32.mxu0 0.0
        %767 = vmatmul.mubr.f32.gmra.mrb[0].mxu0 %v490
        %v768 = vpop.f32.mrb[0].mxu0
        %v769 = vadd.f32 0.0, %v768
        %v770 = vpop.f32.mrb[0].mxu0
        %771 = vdwg.mxu0
        %772 = vmatprep.subr.mxu0 0.0
        %773 = vmatpush1.msra.mxu0 %v457
        %774 = vmatprep.subr.mxu0 0.0
        %775 = vmatpush1.msra.mxu0 %v458
        %776 = vmatprep.subr.mxu0 0.0
        %777 = vmatpush1.msra.mxu0 %v459
        %778 = vmatprep.subr.mxu0 0.0
        %779 = vmatpush1.msra.mxu0 %v460
        %780 = vmatprep.subr.mxu0 0.0
        %781 = vmatpush1.msra.mxu0 0.0
        %782 = vmatprep.subr.mxu0 0.0
        %783 = vmatpush1.msra.mxu0 0.0
        %784 = vmatprep.subr.mxu0 0.0
        %785 = vmatpush1.msra.mxu0 0.0
        %786 = vmatprep.subr.mxu0 0.0
        %787 = vmatpush1.msra.mxu0 0.0
        %788 = vmatprep.subr.mxu0 0.0
        %789 = vmatpush1.msra.mxu0 0.0
        %790 = vmatprep.subr.mxu0 0.0
        %791 = vmatpush1.msra.mxu0 0.0
        %792 = vmatprep.subr.mxu0 0.0
        %793 = vmatpush1.msra.mxu0 0.0
        %794 = vmatprep.subr.mxu0 0.0
        %795 = vmatpush1.msra.mxu0 0.0
        %796 = vmatprep.subr.mxu0 0.0
        %797 = vmatpush1.msra.mxu0 0.0
        %798 = vmatprep.subr.mxu0 0.0
        %799 = vmatpush1.msra.mxu0 0.0
        %800 = vmatprep.subr.mxu0 0.0
        %801 = vmatpush1.msra.mxu0 0.0
        %802 = vmatprep.subr.mxu0 0.0
        %803 = vmatpush1.msra.mxu0 0.0
        %804 = vmatprep.subr.mxu0 0.0
        %805 = vmatpush1.msra.mxu0 0.0
        %806 = vmatprep.subr.mxu0 0.0
        %807 = vmatpush1.msra.mxu0 0.0
        %808 = vmatprep.subr.mxu0 0.0
        %809 = vmatpush1.msra.mxu0 0.0
        %810 = vmatprep.subr.mxu0 0.0
        %811 = vmatpush1.msra.mxu0 0.0
        %812 = vmatprep.subr.mxu0 0.0
        %813 = vmatpush1.msra.mxu0 0.0
        %814 = vmatprep.subr.mxu0 0.0
        %815 = vmatpush1.msra.mxu0 0.0
        %816 = vmatprep.subr.mxu0 0.0
        %817 = vmatpush1.msra.mxu0 0.0
        %818 = vmatprep.subr.mxu0 0.0
        %819 = vmatpush1.msra.mxu0 0.0
        %820 = vmatprep.subr.mxu0 0.0
        %821 = vmatpush1.msra.mxu0 0.0
        %822 = vmatprep.subr.mxu0 0.0
        %823 = vmatpush1.msra.mxu0 0.0
        %824 = vmatprep.subr.mxu0 0.0
        %825 = vmatpush1.msra.mxu0 0.0
        %826 = vmatprep.subr.mxu0 0.0
        %827 = vmatpush1.msra.mxu0 0.0
        %828 = vmatprep.subr.mxu0 0.0
        %829 = vmatpush1.msra.mxu0 0.0
        %830 = vmatprep.subr.mxu0 0.0
        %831 = vmatpush1.msra.mxu0 0.0
        %832 = vmatprep.subr.mxu0 0.0
        %833 = vmatpush1.msra.mxu0 0.0
        %834 = vmatprep.subr.mxu0 0.0
        %835 = vmatpush1.msra.mxu0 0.0
        %836 = vmatprep.mubr.f32.mxu0 0.0
        %837 = vmatmul.mubr.f32.gmra.mrb[0].mxu0 %v490
        %v838 = vpop.f32.mrb[0].mxu0
        %v839 = vadd.f32 0.0, %v838
        %v840 = vpop.f32.mrb[0].mxu0
        %841 = vdwg.mxu0
        %842 = vmatprep.subr.mxu0 0.0
        %843 = vmatpush1.msra.mxu0 %v461
        %844 = vmatprep.subr.mxu0 0.0
        %845 = vmatpush1.msra.mxu0 %v462
        %846 = vmatprep.subr.mxu0 0.0
        %847 = vmatpush1.msra.mxu0 %v463
        %848 = vmatprep.subr.mxu0 0.0
        %849 = vmatpush1.msra.mxu0 %v464
        %850 = vmatprep.subr.mxu0 0.0
        %851 = vmatpush1.msra.mxu0 0.0
        %852 = vmatprep.subr.mxu0 0.0
        %853 = vmatpush1.msra.mxu0 0.0
        %854 = vmatprep.subr.mxu0 0.0
        %855 = vmatpush1.msra.mxu0 0.0
        %856 = vmatprep.subr.mxu0 0.0
        %857 = vmatpush1.msra.mxu0 0.0
        %858 = vmatprep.subr.mxu0 0.0
        %859 = vmatpush1.msra.mxu0 0.0
        %860 = vmatprep.subr.mxu0 0.0
        %861 = vmatpush1.msra.mxu0 0.0
        %862 = vmatprep.subr.mxu0 0.0
        %863 = vmatpush1.msra.mxu0 0.0
        %864 = vmatprep.subr.mxu0 0.0
        %865 = vmatpush1.msra.mxu0 0.0
        %866 = vmatprep.subr.mxu0 0.0
        %867 = vmatpush1.msra.mxu0 0.0
        %868 = vmatprep.subr.mxu0 0.0
        %869 = vmatpush1.msra.mxu0 0.0
        %870 = vmatprep.subr.mxu0 0.0
        %871 = vmatpush1.msra.mxu0 0.0
        %872 = vmatprep.subr.mxu0 0.0
        %873 = vmatpush1.msra.mxu0 0.0
        %874 = vmatprep.subr.mxu0 0.0
        %875 = vmatpush1.msra.mxu0 0.0
        %876 = vmatprep.subr.mxu0 0.0
        %877 = vmatpush1.msra.mxu0 0.0
        %878 = vmatprep.subr.mxu0 0.0
        %879 = vmatpush1.msra.mxu0 0.0
        %880 = vmatprep.subr.mxu0 0.0
        %881 = vmatpush1.msra.mxu0 0.0
        %882 = vmatprep.subr.mxu0 0.0
        %883 = vmatpush1.msra.mxu0 0.0
        %884 = vmatprep.subr.mxu0 0.0
        %885 = vmatpush1.msra.mxu0 0.0
        %886 = vmatprep.subr.mxu0 0.0
        %887 = vmatpush1.msra.mxu0 0.0
        %888 = vmatprep.subr.mxu0 0.0
        %889 = vmatpush1.msra.mxu0 0.0
        %890 = vmatprep.subr.mxu0 0.0
        %891 = vmatpush1.msra.mxu0 0.0
        %892 = vmatprep.subr.mxu0 0.0
        %893 = vmatpush1.msra.mxu0 0.0
        %894 = vmatprep.subr.mxu0 0.0
        %895 = vmatpush1.msra.mxu0 0.0
        %896 = vmatprep.subr.mxu0 0.0
        %897 = vmatpush1.msra.mxu0 0.0
        %898 = vmatprep.subr.mxu0 0.0
        %899 = vmatpush1.msra.mxu0 0.0
        %900 = vmatprep.subr.mxu0 0.0
        %901 = vmatpush1.msra.mxu0 0.0
        %902 = vmatprep.subr.mxu0 0.0
        %903 = vmatpush1.msra.mxu0 0.0
        %904 = vmatprep.subr.mxu0 0.0
        %905 = vmatpush1.msra.mxu0 0.0
        %906 = vmatprep.mubr.f32.mxu0 0.0
        %907 = vmatmul.mubr.f32.gmra.mrb[0].mxu0 %v490
        %v908 = vpop.f32.mrb[0].mxu0
        %v909 = vadd.f32 0.0, %v908
        %v910 = vpop.f32.mrb[0].mxu0
        %911 = vdwg.mxu0
        %912 = vmatprep.subr.mxu0 0.0
        %913 = vmatpush1.msra.mxu0 %v465
        %914 = vmatprep.subr.mxu0 0.0
        %915 = vmatpush1.msra.mxu0 %v466
        %916 = vmatprep.subr.mxu0 0.0
        %917 = vmatpush1.msra.mxu0 %v467
        %918 = vmatprep.subr.mxu0 0.0
        %919 = vmatpush1.msra.mxu0 %v468
        %920 = vmatprep.subr.mxu0 0.0
        %921 = vmatpush1.msra.mxu0 0.0
        %922 = vmatprep.subr.mxu0 0.0
        %923 = vmatpush1.msra.mxu0 0.0
        %924 = vmatprep.subr.mxu0 0.0
        %925 = vmatpush1.msra.mxu0 0.0
        %926 = vmatprep.subr.mxu0 0.0
        %927 = vmatpush1.msra.mxu0 0.0
        %928 = vmatprep.subr.mxu0 0.0
        %929 = vmatpush1.msra.mxu0 0.0
        %930 = vmatprep.subr.mxu0 0.0
        %931 = vmatpush1.msra.mxu0 0.0
        %932 = vmatprep.subr.mxu0 0.0
        %933 = vmatpush1.msra.mxu0 0.0
        %934 = vmatprep.subr.mxu0 0.0
        %935 = vmatpush1.msra.mxu0 0.0
        %936 = vmatprep.subr.mxu0 0.0
        %937 = vmatpush1.msra.mxu0 0.0
        %938 = vmatprep.subr.mxu0 0.0
        %939 = vmatpush1.msra.mxu0 0.0
        %940 = vmatprep.subr.mxu0 0.0
        %941 = vmatpush1.msra.mxu0 0.0
        %942 = vmatprep.subr.mxu0 0.0
        %943 = vmatpush1.msra.mxu0 0.0
        %944 = vmatprep.subr.mxu0 0.0
        %945 = vmatpush1.msra.mxu0 0.0
        %946 = vmatprep.subr.mxu0 0.0
        %947 = vmatpush1.msra.mxu0 0.0
        %948 = vmatprep.subr.mxu0 0.0
        %949 = vmatpush1.msra.mxu0 0.0
        %950 = vmatprep.subr.mxu0 0.0
        %951 = vmatpush1.msra.mxu0 0.0
        %952 = vmatprep.subr.mxu0 0.0
        %953 = vmatpush1.msra.mxu0 0.0
        %954 = vmatprep.subr.mxu0 0.0
        %955 = vmatpush1.msra.mxu0 0.0
        %956 = vmatprep.subr.mxu0 0.0
        %957 = vmatpush1.msra.mxu0 0.0
        %958 = vmatprep.subr.mxu0 0.0
        %959 = vmatpush1.msra.mxu0 0.0
        %960 = vmatprep.subr.mxu0 0.0
        %961 = vmatpush1.msra.mxu0 0.0
        %962 = vmatprep.subr.mxu0 0.0
        %963 = vmatpush1.msra.mxu0 0.0
        %964 = vmatprep.subr.mxu0 0.0
        %965 = vmatpush1.msra.mxu0 0.0
        %966 = vmatprep.subr.mxu0 0.0
        %967 = vmatpush1.msra.mxu0 0.0
        %968 = vmatprep.subr.mxu0 0.0
        %969 = vmatpush1.msra.mxu0 0.0
        %970 = vmatprep.subr.mxu0 0.0
        %971 = vmatpush1.msra.mxu0 0.0
        %972 = vmatprep.subr.mxu0 0.0
        %973 = vmatpush1.msra.mxu0 0.0
        %974 = vmatprep.subr.mxu0 0.0
        %975 = vmatpush1.msra.mxu0 0.0
        %976 = vmatprep.mubr.f32.mxu0 0.0
        %977 = vmatmul.mubr.f32.gmra.mrb[0].mxu0 %v490
        %v978 = vpop.f32.mrb[0].mxu0
        %v979 = vadd.f32 0.0, %v978
        %v980 = vpop.f32.mrb[0].mxu0
        %981 = vdwg.mxu0
        %982 = vmatprep.subr.mxu0 0.0
        %983 = vmatpush1.msra.mxu0 %v469
        %984 = vmatprep.subr.mxu0 0.0
        %985 = vmatpush1.msra.mxu0 %v470
        %986 = vmatprep.subr.mxu0 0.0
        %987 = vmatpush1.msra.mxu0 %v471
        %988 = vmatprep.subr.mxu0 0.0
        %989 = vmatpush1.msra.mxu0 %v472
        %990 = vmatprep.subr.mxu0 0.0
        %991 = vmatpush1.msra.mxu0 0.0
        %992 = vmatprep.subr.mxu0 0.0
        %993 = vmatpush1.msra.mxu0 0.0
        %994 = vmatprep.subr.mxu0 0.0
        %995 = vmatpush1.msra.mxu0 0.0
        %996 = vmatprep.subr.mxu0 0.0
        %997 = vmatpush1.msra.mxu0 0.0
        %998 = vmatprep.subr.mxu0 0.0
        %999 = vmatpush1.msra.mxu0 0.0
        %1000 = vmatprep.subr.mxu0 0.0
        %1001 = vmatpush1.msra.mxu0 0.0
        %1002 = vmatprep.subr.mxu0 0.0
        %1003 = vmatpush1.msra.mxu0 0.0
        %1004 = vmatprep.subr.mxu0 0.0
        %1005 = vmatpush1.msra.mxu0 0.0
        %1006 = vmatprep.subr.mxu0 0.0
        %1007 = vmatpush1.msra.mxu0 0.0
        %1008 = vmatprep.subr.mxu0 0.0
        %1009 = vmatpush1.msra.mxu0 0.0
        %1010 = vmatprep.subr.mxu0 0.0
        %1011 = vmatpush1.msra.mxu0 0.0
        %1012 = vmatprep.subr.mxu0 0.0
        %1013 = vmatpush1.msra.mxu0 0.0
        %1014 = vmatprep.subr.mxu0 0.0
        %1015 = vmatpush1.msra.mxu0 0.0
        %1016 = vmatprep.subr.mxu0 0.0
        %1017 = vmatpush1.msra.mxu0 0.0
        %1018 = vmatprep.subr.mxu0 0.0
        %1019 = vmatpush1.msra.mxu0 0.0
        %1020 = vmatprep.subr.mxu0 0.0
        %1021 = vmatpush1.msra.mxu0 0.0
        %1022 = vmatprep.subr.mxu0 0.0
        %1023 = vmatpush1.msra.mxu0 0.0
        %1024 = vmatprep.subr.mxu0 0.0
        %1025 = vmatpush1.msra.mxu0 0.0
        %1026 = vmatprep.subr.mxu0 0.0
        %1027 = vmatpush1.msra.mxu0 0.0
        %1028 = vmatprep.subr.mxu0 0.0
        %1029 = vmatpush1.msra.mxu0 0.0
        %1030 = vmatprep.subr.mxu0 0.0
        %1031 = vmatpush1.msra.mxu0 0.0
        %1032 = vmatprep.subr.mxu0 0.0
        %1033 = vmatpush1.msra.mxu0 0.0
        %1034 = vmatprep.subr.mxu0 0.0
        %1035 = vmatpush1.msra.mxu0 0.0
        %1036 = vmatprep.subr.mxu0 0.0
        %1037 = vmatpush1.msra.mxu0 0.0
        %1038 = vmatprep.subr.mxu0 0.0
        %1039 = vmatpush1.msra.mxu0 0.0
        %1040 = vmatprep.subr.mxu0 0.0
        %1041 = vmatpush1.msra.mxu0 0.0
        %1042 = vmatprep.subr.mxu0 0.0
        %1043 = vmatpush1.msra.mxu0 0.0
        %1044 = vmatprep.subr.mxu0 0.0
        %1045 = vmatpush1.msra.mxu0 0.0
        %1046 = vmatprep.mubr.f32.mxu0 0.0
        %1047 = vmatmul.mubr.f32.gmra.mrb[0].mxu0 %v490
        %v1048 = vpop.f32.mrb[0].mxu0
        %v1049 = vadd.f32 0.0, %v1048
        %v1050 = vpop.f32.mrb[0].mxu0
        %1051 = vdwg.mxu0
        %1052 = vmatprep.subr.mxu0 0.0
        %1053 = vmatpush1.msra.mxu0 %v473
        %1054 = vmatprep.subr.mxu0 0.0
        %1055 = vmatpush1.msra.mxu0 %v474
        %1056 = vmatprep.subr.mxu0 0.0
        %1057 = vmatpush1.msra.mxu0 %v475
        %1058 = vmatprep.subr.mxu0 0.0
        %1059 = vmatpush1.msra.mxu0 %v476
        %1060 = vmatprep.subr.mxu0 0.0
        %1061 = vmatpush1.msra.mxu0 0.0
        %1062 = vmatprep.subr.mxu0 0.0
        %1063 = vmatpush1.msra.mxu0 0.0
        %1064 = vmatprep.subr.mxu0 0.0
        %1065 = vmatpush1.msra.mxu0 0.0
        %1066 = vmatprep.subr.mxu0 0.0
        %1067 = vmatpush1.msra.mxu0 0.0
        %1068 = vmatprep.subr.mxu0 0.0
        %1069 = vmatpush1.msra.mxu0 0.0
        %1070 = vmatprep.subr.mxu0 0.0
        %1071 = vmatpush1.msra.mxu0 0.0
        %1072 = vmatprep.subr.mxu0 0.0
        %1073 = vmatpush1.msra.mxu0 0.0
        %1074 = vmatprep.subr.mxu0 0.0
        %1075 = vmatpush1.msra.mxu0 0.0
        %1076 = vmatprep.subr.mxu0 0.0
        %1077 = vmatpush1.msra.mxu0 0.0
        %1078 = vmatprep.subr.mxu0 0.0
        %1079 = vmatpush1.msra.mxu0 0.0
        %1080 = vmatprep.subr.mxu0 0.0
        %1081 = vmatpush1.msra.mxu0 0.0
        %1082 = vmatprep.subr.mxu0 0.0
        %1083 = vmatpush1.msra.mxu0 0.0
        %1084 = vmatprep.subr.mxu0 0.0
        %1085 = vmatpush1.msra.mxu0 0.0
        %1086 = vmatprep.subr.mxu0 0.0
        %1087 = vmatpush1.msra.mxu0 0.0
        %1088 = vmatprep.subr.mxu0 0.0
        %1089 = vmatpush1.msra.mxu0 0.0
        %1090 = vmatprep.subr.mxu0 0.0
        %1091 = vmatpush1.msra.mxu0 0.0
        %1092 = vmatprep.subr.mxu0 0.0
        %1093 = vmatpush1.msra.mxu0 0.0
        %1094 = vmatprep.subr.mxu0 0.0
        %1095 = vmatpush1.msra.mxu0 0.0
        %1096 = vmatprep.subr.mxu0 0.0
        %1097 = vmatpush1.msra.mxu0 0.0
        %1098 = vmatprep.subr.mxu0 0.0
        %1099 = vmatpush1.msra.mxu0 0.0
        %1100 = vmatprep.subr.mxu0 0.0
        %1101 = vmatpush1.msra.mxu0 0.0
        %1102 = vmatprep.subr.mxu0 0.0
        %1103 = vmatpush1.msra.mxu0 0.0
        %1104 = vmatprep.subr.mxu0 0.0
        %1105 = vmatpush1.msra.mxu0 0.0
        %1106 = vmatprep.subr.mxu0 0.0
        %1107 = vmatpush1.msra.mxu0 0.0
        %1108 = vmatprep.subr.mxu0 0.0
        %1109 = vmatpush1.msra.mxu0 0.0
        %1110 = vmatprep.subr.mxu0 0.0
        %1111 = vmatpush1.msra.mxu0 0.0
        %1112 = vmatprep.subr.mxu0 0.0
        %1113 = vmatpush1.msra.mxu0 0.0
        %1114 = vmatprep.subr.mxu0 0.0
        %1115 = vmatpush1.msra.mxu0 0.0
        %1116 = vmatprep.mubr.f32.mxu0 0.0
        %1117 = vmatmul.mubr.f32.gmra.mrb[0].mxu0 %v490
        %v1118 = vpop.f32.mrb[0].mxu0
        %v1119 = vadd.f32 0.0, %v1118
        %v1120 = vpop.f32.mrb[0].mxu0
        %1121 = vdwg.mxu0
        %1122 = vmatprep.subr.mxu0 0.0
        %1123 = vmatpush1.msra.mxu0 %v477
        %1124 = vmatprep.subr.mxu0 0.0
        %1125 = vmatpush1.msra.mxu0 %v478
        %1126 = vmatprep.subr.mxu0 0.0
        %1127 = vmatpush1.msra.mxu0 %v479
        %1128 = vmatprep.subr.mxu0 0.0
        %1129 = vmatpush1.msra.mxu0 %v480
        %1130 = vmatprep.subr.mxu0 0.0
        %1131 = vmatpush1.msra.mxu0 0.0
        %1132 = vmatprep.subr.mxu0 0.0
        %1133 = vmatpush1.msra.mxu0 0.0
        %1134 = vmatprep.subr.mxu0 0.0
        %1135 = vmatpush1.msra.mxu0 0.0
        %1136 = vmatprep.subr.mxu0 0.0
        %1137 = vmatpush1.msra.mxu0 0.0
        %1138 = vmatprep.subr.mxu0 0.0
        %1139 = vmatpush1.msra.mxu0 0.0
        %1140 = vmatprep.subr.mxu0 0.0
        %1141 = vmatpush1.msra.mxu0 0.0
        %1142 = vmatprep.subr.mxu0 0.0
        %1143 = vmatpush1.msra.mxu0 0.0
        %1144 = vmatprep.subr.mxu0 0.0
        %1145 = vmatpush1.msra.mxu0 0.0
        %1146 = vmatprep.subr.mxu0 0.0
        %1147 = vmatpush1.msra.mxu0 0.0
        %1148 = vmatprep.subr.mxu0 0.0
        %1149 = vmatpush1.msra.mxu0 0.0
        %1150 = vmatprep.subr.mxu0 0.0
        %1151 = vmatpush1.msra.mxu0 0.0
        %1152 = vmatprep.subr.mxu0 0.0
        %1153 = vmatpush1.msra.mxu0 0.0
        %1154 = vmatprep.subr.mxu0 0.0
        %1155 = vmatpush1.msra.mxu0 0.0
        %1156 = vmatprep.subr.mxu0 0.0
        %1157 = vmatpush1.msra.mxu0 0.0
        %1158 = vmatprep.subr.mxu0 0.0
        %1159 = vmatpush1.msra.mxu0 0.0
        %1160 = vmatprep.subr.mxu0 0.0
        %1161 = vmatpush1.msra.mxu0 0.0
        %1162 = vmatprep.subr.mxu0 0.0
        %1163 = vmatpush1.msra.mxu0 0.0
        %1164 = vmatprep.subr.mxu0 0.0
        %1165 = vmatpush1.msra.mxu0 0.0
        %1166 = vmatprep.subr.mxu0 0.0
        %1167 = vmatpush1.msra.mxu0 0.0
        %1168 = vmatprep.subr.mxu0 0.0
        %1169 = vmatpush1.msra.mxu0 0.0
        %1170 = vmatprep.subr.mxu0 0.0
        %1171 = vmatpush1.msra.mxu0 0.0
        %1172 = vmatprep.subr.mxu0 0.0
        %1173 = vmatpush1.msra.mxu0 0.0
        %1174 = vmatprep.subr.mxu0 0.0
        %1175 = vmatpush1.msra.mxu0 0.0
        %1176 = vmatprep.subr.mxu0 0.0
        %1177 = vmatpush1.msra.mxu0 0.0
        %1178 = vmatprep.subr.mxu0 0.0
        %1179 = vmatpush1.msra.mxu0 0.0
        %1180 = vmatprep.subr.mxu0 0.0
        %1181 = vmatpush1.msra.mxu0 0.0
        %1182 = vmatprep.subr.mxu0 0.0
        %1183 = vmatpush1.msra.mxu0 0.0
        %1184 = vmatprep.subr.mxu0 0.0
        %1185 = vmatpush1.msra.mxu0 0.0
        %1186 = vmatprep.mubr.f32.mxu0 0.0
        %1187 = vmatmul.mubr.f32.gmra.mrb[0].mxu0 %v490
        %v1188 = vpop.f32.mrb[0].mxu0
        %v1189 = vadd.f32 0.0, %v1188
        %v1190 = vpop.f32.mrb[0].mxu0
        %1191 = vdwg.mxu0
        %1192 = vmatprep.subr.mxu0 0.0
        %1193 = vmatpush1.msra.mxu0 %v481
        %1194 = vmatprep.subr.mxu0 0.0
        %1195 = vmatpush1.msra.mxu0 %v482
        %1196 = vmatprep.subr.mxu0 0.0
        %1197 = vmatpush1.msra.mxu0 %v483
        %1198 = vmatprep.subr.mxu0 0.0
        %1199 = vmatpush1.msra.mxu0 %v484
        %1200 = vmatprep.subr.mxu0 0.0
        %1201 = vmatpush1.msra.mxu0 0.0
        %1202 = vmatprep.subr.mxu0 0.0
        %1203 = vmatpush1.msra.mxu0 0.0
        %1204 = vmatprep.subr.mxu0 0.0
        %1205 = vmatpush1.msra.mxu0 0.0
        %1206 = vmatprep.subr.mxu0 0.0
        %1207 = vmatpush1.msra.mxu0 0.0
        %1208 = vmatprep.subr.mxu0 0.0
        %1209 = vmatpush1.msra.mxu0 0.0
        %1210 = vmatprep.subr.mxu0 0.0
        %1211 = vmatpush1.msra.mxu0 0.0
        %1212 = vmatprep.subr.mxu0 0.0
        %1213 = vmatpush1.msra.mxu0 0.0
        %1214 = vmatprep.subr.mxu0 0.0
        %1215 = vmatpush1.msra.mxu0 0.0
        %1216 = vmatprep.subr.mxu0 0.0
        %1217 = vmatpush1.msra.mxu0 0.0
        %1218 = vmatprep.subr.mxu0 0.0
        %1219 = vmatpush1.msra.mxu0 0.0
        %1220 = vmatprep.subr.mxu0 0.0
        %1221 = vmatpush1.msra.mxu0 0.0
        %1222 = vmatprep.subr.mxu0 0.0
        %1223 = vmatpush1.msra.mxu0 0.0
        %1224 = vmatprep.subr.mxu0 0.0
        %1225 = vmatpush1.msra.mxu0 0.0
        %1226 = vmatprep.subr.mxu0 0.0
        %1227 = vmatpush1.msra.mxu0 0.0
        %1228 = vmatprep.subr.mxu0 0.0
        %1229 = vmatpush1.msra.mxu0 0.0
        %1230 = vmatprep.subr.mxu0 0.0
        %1231 = vmatpush1.msra.mxu0 0.0
        %1232 = vmatprep.subr.mxu0 0.0
        %1233 = vmatpush1.msra.mxu0 0.0
        %1234 = vmatprep.subr.mxu0 0.0
        %1235 = vmatpush1.msra.mxu0 0.0
        %1236 = vmatprep.subr.mxu0 0.0
        %1237 = vmatpush1.msra.mxu0 0.0
        %1238 = vmatprep.subr.mxu0 0.0
        %1239 = vmatpush1.msra.mxu0 0.0
        %1240 = vmatprep.subr.mxu0 0.0
        %1241 = vmatpush1.msra.mxu0 0.0
        %1242 = vmatprep.subr.mxu0 0.0
        %1243 = vmatpush1.msra.mxu0 0.0
        %1244 = vmatprep.subr.mxu0 0.0
        %1245 = vmatpush1.msra.mxu0 0.0
        %1246 = vmatprep.subr.mxu0 0.0
        %1247 = vmatpush1.msra.mxu0 0.0
        %1248 = vmatprep.subr.mxu0 0.0
        %1249 = vmatpush1.msra.mxu0 0.0
        %1250 = vmatprep.subr.mxu0 0.0
        %1251 = vmatpush1.msra.mxu0 0.0
        %1252 = vmatprep.subr.mxu0 0.0
        %1253 = vmatpush1.msra.mxu0 0.0
        %1254 = vmatprep.subr.mxu0 0.0
        %1255 = vmatpush1.msra.mxu0 0.0
        %1256 = vmatprep.mubr.f32.mxu0 0.0
        %1257 = vmatmul.mubr.f32.gmra.mrb[0].mxu0 %v490
        %v1258 = vpop.f32.mrb[0].mxu0
        %v1259 = vadd.f32 0.0, %v1258
        %v1260 = vpop.f32.mrb[0].mxu0
        %1261 = vdwg.mxu0
        %1262 = vmatprep.subr.mxu0 0.0
        %1263 = vmatpush1.msra.mxu0 %v485
        %1264 = vmatprep.subr.mxu0 0.0
        %1265 = vmatpush1.msra.mxu0 %v486
        %1266 = vmatprep.subr.mxu0 0.0
        %1267 = vmatpush1.msra.mxu0 %v487
        %1268 = vmatprep.subr.mxu0 0.0
        %1269 = vmatpush1.msra.mxu0 %v488
        %1270 = vmatprep.subr.mxu0 0.0
        %1271 = vmatpush1.msra.mxu0 0.0
        %1272 = vmatprep.subr.mxu0 0.0
        %1273 = vmatpush1.msra.mxu0 0.0
        %1274 = vmatprep.subr.mxu0 0.0
        %1275 = vmatpush1.msra.mxu0 0.0
        %1276 = vmatprep.subr.mxu0 0.0
        %1277 = vmatpush1.msra.mxu0 0.0
        %1278 = vmatprep.subr.mxu0 0.0
        %1279 = vmatpush1.msra.mxu0 0.0
        %1280 = vmatprep.subr.mxu0 0.0
        %1281 = vmatpush1.msra.mxu0 0.0
        %1282 = vmatprep.subr.mxu0 0.0
        %1283 = vmatpush1.msra.mxu0 0.0
        %1284 = vmatprep.subr.mxu0 0.0
        %1285 = vmatpush1.msra.mxu0 0.0
        %1286 = vmatprep.subr.mxu0 0.0
        %1287 = vmatpush1.msra.mxu0 0.0
        %1288 = vmatprep.subr.mxu0 0.0
        %1289 = vmatpush1.msra.mxu0 0.0
        %1290 = vmatprep.subr.mxu0 0.0
        %1291 = vmatpush1.msra.mxu0 0.0
        %1292 = vmatprep.subr.mxu0 0.0
        %1293 = vmatpush1.msra.mxu0 0.0
        %1294 = vmatprep.subr.mxu0 0.0
        %1295 = vmatpush1.msra.mxu0 0.0
        %1296 = vmatprep.subr.mxu0 0.0
        %1297 = vmatpush1.msra.mxu0 0.0
        %1298 = vmatprep.subr.mxu0 0.0
        %1299 = vmatpush1.msra.mxu0 0.0
        %1300 = vmatprep.subr.mxu0 0.0
        %1301 = vmatpush1.msra.mxu0 0.0
        %1302 = vmatprep.subr.mxu0 0.0
        %1303 = vmatpush1.msra.mxu0 0.0
        %1304 = vmatprep.subr.mxu0 0.0
        %1305 = vmatpush1.msra.mxu0 0.0
        %1306 = vmatprep.subr.mxu0 0.0
        %1307 = vmatpush1.msra.mxu0 0.0
        %1308 = vmatprep.subr.mxu0 0.0
        %1309 = vmatpush1.msra.mxu0 0.0
        %1310 = vmatprep.subr.mxu0 0.0
        %1311 = vmatpush1.msra.mxu0 0.0
        %1312 = vmatprep.subr.mxu0 0.0
        %1313 = vmatpush1.msra.mxu0 0.0
        %1314 = vmatprep.subr.mxu0 0.0
        %1315 = vmatpush1.msra.mxu0 0.0
        %1316 = vmatprep.subr.mxu0 0.0
        %1317 = vmatpush1.msra.mxu0 0.0
        %1318 = vmatprep.subr.mxu0 0.0
        %1319 = vmatpush1.msra.mxu0 0.0
        %1320 = vmatprep.subr.mxu0 0.0
        %1321 = vmatpush1.msra.mxu0 0.0
        %1322 = vmatprep.subr.mxu0 0.0
        %1323 = vmatpush1.msra.mxu0 0.0
        %1324 = vmatprep.subr.mxu0 0.0
        %1325 = vmatpush1.msra.mxu0 0.0
        %1326 = vmatprep.mubr.f32.mxu0 0.0
        %1327 = vmatmul.mubr.f32.gmra.mrb[0].mxu0 %v490
        %v1328 = vpop.f32.mrb[0].mxu0
        %v1329 = vadd.f32 0.0, %v1328
        %v1330 = vpop.f32.mrb[0].mxu0
        %1331 = vdwg.mxu0
        %v1332 = vmul.f32 %v559, 0.35355338
        %v1333 = vmul.f32 %v629, 0.35355338
        %v1334 = vmul.f32 %v699, 0.35355338
        %v1335 = vmul.f32 %v769, 0.35355338
        %vm1336 = vcmask 64512
        %v1338 = vsel %vm1336, %v1332, 0
        %v1341 = vsel %vm1336, %v839, 0
        %1343 = vmatprep.subr.mxu0 0.0
        %1344 = vmatpush1.xpose.msra.mxu0 %v1341
        %1345 = vmatprep.subr.mxu0 0.0
        %1346 = vmatpush1.xpose.msra.mxu0 0.0
        %1347 = vmatprep.subr.mxu0 0.0
        %1348 = vmatpush1.xpose.msra.mxu0 0.0
        %1349 = vmatprep.subr.mxu0 0.0
        %1350 = vmatpush1.xpose.msra.mxu0 0.0
        %1351 = vmatprep.subr.mxu0 0.0
        %1352 = vmatpush1.xpose.msra.mxu0 0.0
        %1353 = vmatprep.subr.mxu0 0.0
        %1354 = vmatpush1.xpose.msra.mxu0 0.0
        %1355 = vmatprep.subr.mxu0 0.0
        %1356 = vmatpush1.xpose.msra.mxu0 0.0
        %1357 = vmatprep.subr.mxu0 0.0
        %1358 = vmatpush1.xpose.msra.mxu0 0.0
        %1359 = vmatprep.subr.mxu0 0.0
        %1360 = vmatpush1.xpose.msra.mxu0 0.0
        %1361 = vmatprep.subr.mxu0 0.0
        %1362 = vmatpush1.xpose.msra.mxu0 0.0
        %1363 = vmatprep.subr.mxu0 0.0
        %1364 = vmatpush1.xpose.msra.mxu0 0.0
        %1365 = vmatprep.subr.mxu0 0.0
        %1366 = vmatpush1.xpose.msra.mxu0 0.0
        %1367 = vmatprep.subr.mxu0 0.0
        %1368 = vmatpush1.xpose.msra.mxu0 0.0
        %1369 = vmatprep.subr.mxu0 0.0
        %1370 = vmatpush1.xpose.msra.mxu0 0.0
        %1371 = vmatprep.subr.mxu0 0.0
        %1372 = vmatpush1.xpose.msra.mxu0 0.0
        %1373 = vmatprep.subr.mxu0 0.0
        %1374 = vmatpush1.xpose.msra.mxu0 0.0
        %1375 = vmatprep.subr.mxu0 0.0
        %1376 = vmatpush1.xpose.msra.mxu0 0.0
        %1377 = vmatprep.subr.mxu0 0.0
        %1378 = vmatpush1.xpose.msra.mxu0 0.0
        %1379 = vmatprep.subr.mxu0 0.0
        %1380 = vmatpush1.xpose.msra.mxu0 0.0
        %1381 = vmatprep.subr.mxu0 0.0
        %1382 = vmatpush1.xpose.msra.mxu0 0.0
        %1383 = vmatprep.subr.mxu0 0.0
        %1384 = vmatpush1.xpose.msra.mxu0 0.0
        %1385 = vmatprep.subr.mxu0 0.0
        %1386 = vmatpush1.xpose.msra.mxu0 0.0
        %1387 = vmatprep.subr.mxu0 0.0
        %1388 = vmatpush1.xpose.msra.mxu0 0.0
        %1389 = vmatprep.subr.mxu0 0.0
        %1390 = vmatpush1.xpose.msra.mxu0 0.0
        %1391 = vmatprep.subr.mxu0 0.0
        %1392 = vmatpush1.xpose.msra.mxu0 0.0
        %1393 = vmatprep.subr.mxu0 0.0
        %1394 = vmatpush1.xpose.msra.mxu0 0.0
        %1395 = vmatprep.subr.mxu0 0.0
        %1396 = vmatpush1.xpose.msra.mxu0 0.0
        %1397 = vmatprep.subr.mxu0 0.0
        %1398 = vmatpush1.xpose.msra.mxu0 0.0
        %1399 = vmatprep.subr.mxu0 0.0
        %1400 = vmatpush1.xpose.msra.mxu0 0.0
        %1401 = vmatprep.subr.mxu0 0.0
        %1402 = vmatpush1.xpose.msra.mxu0 0.0
        %1403 = vmatprep.subr.mxu0 0.0
        %1404 = vmatpush1.xpose.msra.mxu0 0.0
        %1405 = vmatprep.subr.mxu0 0.0
        %1406 = vmatpush1.xpose.msra.mxu0 0.0
        %1407 = vmatprep.mubr.f32.mxu0 0.0
        %1408 = vmatmul.mubr.f32.gmra.mrb[0].mxu0 %v1338
        %v1409 = vpop.f32.mrb[0].mxu0
        %v1410 = vadd.f32 0.0, %v1409
        %v1411 = vpop.f32.mrb[0].mxu0
        %1412 = vdwg.mxu0
        %v1414 = vsel %vm1336, %v1333, 0
        %v1417 = vsel %vm1336, %v909, 0
        %1419 = vmatprep.subr.mxu0 0.0
        %1420 = vmatpush1.xpose.msra.mxu0 %v1417
        %1421 = vmatprep.subr.mxu0 0.0
        %1422 = vmatpush1.xpose.msra.mxu0 0.0
        %1423 = vmatprep.subr.mxu0 0.0
        %1424 = vmatpush1.xpose.msra.mxu0 0.0
        %1425 = vmatprep.subr.mxu0 0.0
        %1426 = vmatpush1.xpose.msra.mxu0 0.0
        %1427 = vmatprep.subr.mxu0 0.0
        %1428 = vmatpush1.xpose.msra.mxu0 0.0
        %1429 = vmatprep.subr.mxu0 0.0
        %1430 = vmatpush1.xpose.msra.mxu0 0.0
        %1431 = vmatprep.subr.mxu0 0.0
        %1432 = vmatpush1.xpose.msra.mxu0 0.0
        %1433 = vmatprep.subr.mxu0 0.0
        %1434 = vmatpush1.xpose.msra.mxu0 0.0
        %1435 = vmatprep.subr.mxu0 0.0
        %1436 = vmatpush1.xpose.msra.mxu0 0.0
        %1437 = vmatprep.subr.mxu0 0.0
        %1438 = vmatpush1.xpose.msra.mxu0 0.0
        %1439 = vmatprep.subr.mxu0 0.0
        %1440 = vmatpush1.xpose.msra.mxu0 0.0
        %1441 = vmatprep.subr.mxu0 0.0
        %1442 = vmatpush1.xpose.msra.mxu0 0.0
        %1443 = vmatprep.subr.mxu0 0.0
        %1444 = vmatpush1.xpose.msra.mxu0 0.0
        %1445 = vmatprep.subr.mxu0 0.0
        %1446 = vmatpush1.xpose.msra.mxu0 0.0
        %1447 = vmatprep.subr.mxu0 0.0
        %1448 = vmatpush1.xpose.msra.mxu0 0.0
        %1449 = vmatprep.subr.mxu0 0.0
        %1450 = vmatpush1.xpose.msra.mxu0 0.0
        %1451 = vmatprep.subr.mxu0 0.0
        %1452 = vmatpush1.xpose.msra.mxu0 0.0
        %1453 = vmatprep.subr.mxu0 0.0
        %1454 = vmatpush1.xpose.msra.mxu0 0.0
        %1455 = vmatprep.subr.mxu0 0.0
        %1456 = vmatpush1.xpose.msra.mxu0 0.0
        %1457 = vmatprep.subr.mxu0 0.0
        %1458 = vmatpush1.xpose.msra.mxu0 0.0
        %1459 = vmatprep.subr.mxu0 0.0
        %1460 = vmatpush1.xpose.msra.mxu0 0.0
        %1461 = vmatprep.subr.mxu0 0.0
        %1462 = vmatpush1.xpose.msra.mxu0 0.0
        %1463 = vmatprep.subr.mxu0 0.0
        %1464 = vmatpush1.xpose.msra.mxu0 0.0
        %1465 = vmatprep.subr.mxu0 0.0
        %1466 = vmatpush1.xpose.msra.mxu0 0.0
        %1467 = vmatprep.subr.mxu0 0.0
        %1468 = vmatpush1.xpose.msra.mxu0 0.0
        %1469 = vmatprep.subr.mxu0 0.0
        %1470 = vmatpush1.xpose.msra.mxu0 0.0
        %1471 = vmatprep.subr.mxu0 0.0
        %1472 = vmatpush1.xpose.msra.mxu0 0.0
        %1473 = vmatprep.subr.mxu0 0.0
        %1474 = vmatpush1.xpose.msra.mxu0 0.0
        %1475 = vmatprep.subr.mxu0 0.0
        %1476 = vmatpush1.xpose.msra.mxu0 0.0
        %1477 = vmatprep.subr.mxu0 0.0
        %1478 = vmatpush1.xpose.msra.mxu0 0.0
        %1479 = vmatprep.subr.mxu0 0.0
        %1480 = vmatpush1.xpose.msra.mxu0 0.0
        %1481 = vmatprep.subr.mxu0 0.0
        %1482 = vmatpush1.xpose.msra.mxu0 0.0
        %1483 = vmatprep.mubr.f32.mxu0 0.0
        %1484 = vmatmul.mubr.f32.gmra.mrb[0].mxu0 %v1414
        %v1485 = vpop.f32.mrb[0].mxu0
        %v1486 = vadd.f32 0.0, %v1485
        %v1487 = vpop.f32.mrb[0].mxu0
        %1488 = vdwg.mxu0
        %v1490 = vsel %vm1336, %v1334, 0
        %v1493 = vsel %vm1336, %v979, 0
        %1495 = vmatprep.subr.mxu0 0.0
        %1496 = vmatpush1.xpose.msra.mxu0 %v1493
        %1497 = vmatprep.subr.mxu0 0.0
        %1498 = vmatpush1.xpose.msra.mxu0 0.0
        %1499 = vmatprep.subr.mxu0 0.0
        %1500 = vmatpush1.xpose.msra.mxu0 0.0
        %1501 = vmatprep.subr.mxu0 0.0
        %1502 = vmatpush1.xpose.msra.mxu0 0.0
        %1503 = vmatprep.subr.mxu0 0.0
        %1504 = vmatpush1.xpose.msra.mxu0 0.0
        %1505 = vmatprep.subr.mxu0 0.0
        %1506 = vmatpush1.xpose.msra.mxu0 0.0
        %1507 = vmatprep.subr.mxu0 0.0
        %1508 = vmatpush1.xpose.msra.mxu0 0.0
        %1509 = vmatprep.subr.mxu0 0.0
        %1510 = vmatpush1.xpose.msra.mxu0 0.0
        %1511 = vmatprep.subr.mxu0 0.0
        %1512 = vmatpush1.xpose.msra.mxu0 0.0
        %1513 = vmatprep.subr.mxu0 0.0
        %1514 = vmatpush1.xpose.msra.mxu0 0.0
        %1515 = vmatprep.subr.mxu0 0.0
        %1516 = vmatpush1.xpose.msra.mxu0 0.0
        %1517 = vmatprep.subr.mxu0 0.0
        %1518 = vmatpush1.xpose.msra.mxu0 0.0
        %1519 = vmatprep.subr.mxu0 0.0
        %1520 = vmatpush1.xpose.msra.mxu0 0.0
        %1521 = vmatprep.subr.mxu0 0.0
        %1522 = vmatpush1.xpose.msra.mxu0 0.0
        %1523 = vmatprep.subr.mxu0 0.0
        %1524 = vmatpush1.xpose.msra.mxu0 0.0
        %1525 = vmatprep.subr.mxu0 0.0
        %1526 = vmatpush1.xpose.msra.mxu0 0.0
        %1527 = vmatprep.subr.mxu0 0.0
        %1528 = vmatpush1.xpose.msra.mxu0 0.0
        %1529 = vmatprep.subr.mxu0 0.0
        %1530 = vmatpush1.xpose.msra.mxu0 0.0
        %1531 = vmatprep.subr.mxu0 0.0
        %1532 = vmatpush1.xpose.msra.mxu0 0.0
        %1533 = vmatprep.subr.mxu0 0.0
        %1534 = vmatpush1.xpose.msra.mxu0 0.0
        %1535 = vmatprep.subr.mxu0 0.0
        %1536 = vmatpush1.xpose.msra.mxu0 0.0
        %1537 = vmatprep.subr.mxu0 0.0
        %1538 = vmatpush1.xpose.msra.mxu0 0.0
        %1539 = vmatprep.subr.mxu0 0.0
        %1540 = vmatpush1.xpose.msra.mxu0 0.0
        %1541 = vmatprep.subr.mxu0 0.0
        %1542 = vmatpush1.xpose.msra.mxu0 0.0
        %1543 = vmatprep.subr.mxu0 0.0
        %1544 = vmatpush1.xpose.msra.mxu0 0.0
        %1545 = vmatprep.subr.mxu0 0.0
        %1546 = vmatpush1.xpose.msra.mxu0 0.0
        %1547 = vmatprep.subr.mxu0 0.0
        %1548 = vmatpush1.xpose.msra.mxu0 0.0
        %1549 = vmatprep.subr.mxu0 0.0
        %1550 = vmatpush1.xpose.msra.mxu0 0.0
        %1551 = vmatprep.subr.mxu0 0.0
        %1552 = vmatpush1.xpose.msra.mxu0 0.0
        %1553 = vmatprep.subr.mxu0 0.0
        %1554 = vmatpush1.xpose.msra.mxu0 0.0
        %1555 = vmatprep.subr.mxu0 0.0
        %1556 = vmatpush1.xpose.msra.mxu0 0.0
        %1557 = vmatprep.subr.mxu0 0.0
        %1558 = vmatpush1.xpose.msra.mxu0 0.0
        %1559 = vmatprep.mubr.f32.mxu0 0.0
        %1560 = vmatmul.mubr.f32.gmra.mrb[0].mxu0 %v1490
        %v1561 = vpop.f32.mrb[0].mxu0
        %v1562 = vadd.f32 0.0, %v1561
        %v1563 = vpop.f32.mrb[0].mxu0
        %1564 = vdwg.mxu0
        %v1566 = vsel %vm1336, %v1335, 0
        %v1569 = vsel %vm1336, %v1049, 0
        %1571 = vmatprep.subr.mxu0 0.0
        %1572 = vmatpush1.xpose.msra.mxu0 %v1569
        %1573 = vmatprep.subr.mxu0 0.0
        %1574 = vmatpush1.xpose.msra.mxu0 0.0
        %1575 = vmatprep.subr.mxu0 0.0
        %1576 = vmatpush1.xpose.msra.mxu0 0.0
        %1577 = vmatprep.subr.mxu0 0.0
        %1578 = vmatpush1.xpose.msra.mxu0 0.0
        %1579 = vmatprep.subr.mxu0 0.0
        %1580 = vmatpush1.xpose.msra.mxu0 0.0
        %1581 = vmatprep.subr.mxu0 0.0
        %1582 = vmatpush1.xpose.msra.mxu0 0.0
        %1583 = vmatprep.subr.mxu0 0.0
        %1584 = vmatpush1.xpose.msra.mxu0 0.0
        %1585 = vmatprep.subr.mxu0 0.0
        %1586 = vmatpush1.xpose.msra.mxu0 0.0
        %1587 = vmatprep.subr.mxu0 0.0
        %1588 = vmatpush1.xpose.msra.mxu0 0.0
        %1589 = vmatprep.subr.mxu0 0.0
        %1590 = vmatpush1.xpose.msra.mxu0 0.0
        %1591 = vmatprep.subr.mxu0 0.0
        %1592 = vmatpush1.xpose.msra.mxu0 0.0
        %1593 = vmatprep.subr.mxu0 0.0
        %1594 = vmatpush1.xpose.msra.mxu0 0.0
        %1595 = vmatprep.subr.mxu0 0.0
        %1596 = vmatpush1.xpose.msra.mxu0 0.0
        %1597 = vmatprep.subr.mxu0 0.0
        %1598 = vmatpush1.xpose.msra.mxu0 0.0
        %1599 = vmatprep.subr.mxu0 0.0
        %1600 = vmatpush1.xpose.msra.mxu0 0.0
        %1601 = vmatprep.subr.mxu0 0.0
        %1602 = vmatpush1.xpose.msra.mxu0 0.0
        %1603 = vmatprep.subr.mxu0 0.0
        %1604 = vmatpush1.xpose.msra.mxu0 0.0
        %1605 = vmatprep.subr.mxu0 0.0
        %1606 = vmatpush1.xpose.msra.mxu0 0.0
        %1607 = vmatprep.subr.mxu0 0.0
        %1608 = vmatpush1.xpose.msra.mxu0 0.0
        %1609 = vmatprep.subr.mxu0 0.0
        %1610 = vmatpush1.xpose.msra.mxu0 0.0
        %1611 = vmatprep.subr.mxu0 0.0
        %1612 = vmatpush1.xpose.msra.mxu0 0.0
        %1613 = vmatprep.subr.mxu0 0.0
        %1614 = vmatpush1.xpose.msra.mxu0 0.0
        %1615 = vmatprep.subr.mxu0 0.0
        %1616 = vmatpush1.xpose.msra.mxu0 0.0
        %1617 = vmatprep.subr.mxu0 0.0
        %1618 = vmatpush1.xpose.msra.mxu0 0.0
        %1619 = vmatprep.subr.mxu0 0.0
        %1620 = vmatpush1.xpose.msra.mxu0 0.0
        %1621 = vmatprep.subr.mxu0 0.0
        %1622 = vmatpush1.xpose.msra.mxu0 0.0
        %1623 = vmatprep.subr.mxu0 0.0
        %1624 = vmatpush1.xpose.msra.mxu0 0.0
        %1625 = vmatprep.subr.mxu0 0.0
        %1626 = vmatpush1.xpose.msra.mxu0 0.0
        %1627 = vmatprep.subr.mxu0 0.0
        %1628 = vmatpush1.xpose.msra.mxu0 0.0
        %1629 = vmatprep.subr.mxu0 0.0
        %1630 = vmatpush1.xpose.msra.mxu0 0.0
        %1631 = vmatprep.subr.mxu0 0.0
        %1632 = vmatpush1.xpose.msra.mxu0 0.0
        %1633 = vmatprep.subr.mxu0 0.0
        %1634 = vmatpush1.xpose.msra.mxu0 0.0
        %1635 = vmatprep.mubr.f32.mxu0 0.0
        %1636 = vmatmul.mubr.f32.gmra.mrb[0].mxu0 %v1566
        %v1637 = vpop.f32.mrb[0].mxu0
        %v1638 = vadd.f32 0.0, %v1637
        %v1639 = vpop.f32.mrb[0].mxu0
        %1640 = vdwg.mxu0
        %v1641 = vsel %vm1336, %v1410, -inf
        %1642 = vmax.xlane.f32.xlu0 %v1641
        %v1643 = vpop.xlane.xlu0 %1642
        %v1644 = vsel %vm1336, %v1486, -inf
        %1645 = vmax.xlane.f32.xlu0 %v1644
        %v1646 = vpop.xlane.xlu0 %1645
        %v1647 = vsel %vm1336, %v1562, -inf
        %1648 = vmax.xlane.f32.xlu0 %v1647
        %v1649 = vpop.xlane.xlu0 %1648
        %v1650 = vsel %vm1336, %v1638, -inf
        %1651 = vmax.xlane.f32.xlu0 %v1650
        %v1652 = vpop.xlane.xlu0 %1651
        %v1653 = vsub.f32 %v1410, %v1643
        %v1654 = vsub.f32 %v1486, %v1646
        %v1655 = vsub.f32 %v1562, %v1649
        %v1656 = vsub.f32 %v1638, %v1652
        %v1657 = vmul.f32 %v1653, 1.442695
        %v1658 = vpow.pop %v1657
        %v1659 = vmul.f32 %v1654, 1.442695
        %v1660 = vpow.pop %v1659
        %v1661 = vmul.f32 %v1655, 1.442695
        %v1662 = vpow.pop %v1661
        %v1663 = vmul.f32 %v1656, 1.442695
        %v1664 = vpow.pop %v1663
        %v1665 = vsel %vm1336, %v1658, 0.0
        %1666 = vadd.xlane.f32.xlu0 %v1665
        %v1667 = vpop.xlane.xlu0 %1666
        %v1668 = vsel %vm1336, %v1660, 0.0
        %1669 = vadd.xlane.f32.xlu0 %v1668
        %v1670 = vpop.xlane.xlu0 %1669
        %v1671 = vsel %vm1336, %v1662, 0.0
        %1672 = vadd.xlane.f32.xlu0 %v1671
        %v1673 = vpop.xlane.xlu0 %1672
        %v1674 = vsel %vm1336, %v1664, 0.0
        %1675 = vadd.xlane.f32.xlu0 %v1674
        %v1676 = vpop.xlane.xlu0 %1675
        %v1678 = vsel %vm1336, %v1658, 0
        %1680 = vmatprep.subr.mxu0 0.0
        %1681 = vmatpush1.msra.mxu0 %v1119
        %1682 = vmatprep.subr.mxu0 0.0
        %1683 = vmatpush1.msra.mxu0 0.0
        %1684 = vmatprep.subr.mxu0 0.0
        %1685 = vmatpush1.msra.mxu0 0.0
        %1686 = vmatprep.subr.mxu0 0.0
        %1687 = vmatpush1.msra.mxu0 0.0
        %1688 = vmatprep.subr.mxu0 0.0
        %1689 = vmatpush1.msra.mxu0 0.0
        %1690 = vmatprep.subr.mxu0 0.0
        %1691 = vmatpush1.msra.mxu0 0.0
        %1692 = vmatprep.subr.mxu0 0.0
        %1693 = vmatpush1.msra.mxu0 0.0
        %1694 = vmatprep.subr.mxu0 0.0
        %1695 = vmatpush1.msra.mxu0 0.0
        %1696 = vmatprep.subr.mxu0 0.0
        %1697 = vmatpush1.msra.mxu0 0.0
        %1698 = vmatprep.subr.mxu0 0.0
        %1699 = vmatpush1.msra.mxu0 0.0
        %1700 = vmatprep.subr.mxu0 0.0
        %1701 = vmatpush1.msra.mxu0 0.0
        %1702 = vmatprep.subr.mxu0 0.0
        %1703 = vmatpush1.msra.mxu0 0.0
        %1704 = vmatprep.subr.mxu0 0.0
        %1705 = vmatpush1.msra.mxu0 0.0
        %1706 = vmatprep.subr.mxu0 0.0
        %1707 = vmatpush1.msra.mxu0 0.0
        %1708 = vmatprep.subr.mxu0 0.0
        %1709 = vmatpush1.msra.mxu0 0.0
        %1710 = vmatprep.subr.mxu0 0.0
        %1711 = vmatpush1.msra.mxu0 0.0
        %1712 = vmatprep.subr.mxu0 0.0
        %1713 = vmatpush1.msra.mxu0 0.0
        %1714 = vmatprep.subr.mxu0 0.0
        %1715 = vmatpush1.msra.mxu0 0.0
        %1716 = vmatprep.subr.mxu0 0.0
        %1717 = vmatpush1.msra.mxu0 0.0
        %1718 = vmatprep.subr.mxu0 0.0
        %1719 = vmatpush1.msra.mxu0 0.0
        %1720 = vmatprep.subr.mxu0 0.0
        %1721 = vmatpush1.msra.mxu0 0.0
        %1722 = vmatprep.subr.mxu0 0.0
        %1723 = vmatpush1.msra.mxu0 0.0
        %1724 = vmatprep.subr.mxu0 0.0
        %1725 = vmatpush1.msra.mxu0 0.0
        %1726 = vmatprep.subr.mxu0 0.0
        %1727 = vmatpush1.msra.mxu0 0.0
        %1728 = vmatprep.subr.mxu0 0.0
        %1729 = vmatpush1.msra.mxu0 0.0
        %1730 = vmatprep.subr.mxu0 0.0
        %1731 = vmatpush1.msra.mxu0 0.0
        %1732 = vmatprep.subr.mxu0 0.0
        %1733 = vmatpush1.msra.mxu0 0.0
        %1734 = vmatprep.subr.mxu0 0.0
        %1735 = vmatpush1.msra.mxu0 0.0
        %1736 = vmatprep.subr.mxu0 0.0
        %1737 = vmatpush1.msra.mxu0 0.0
        %1738 = vmatprep.subr.mxu0 0.0
        %1739 = vmatpush1.msra.mxu0 0.0
        %1740 = vmatprep.subr.mxu0 0.0
        %1741 = vmatpush1.msra.mxu0 0.0
        %1742 = vmatprep.subr.mxu0 0.0
        %1743 = vmatpush1.msra.mxu0 0.0
        %1744 = vmatprep.mubr.f32.mxu0 0.0
        %1745 = vmatmul.mubr.f32.gmra.mrb[0].mxu0 %v1678
        %v1746 = vpop.f32.mrb[0].mxu0
        %v1747 = vadd.f32 0.0, %v1746
        %v1748 = vpop.f32.mrb[0].mxu0
        %1749 = vdwg.mxu0
        %v1751 = vsel %vm1336, %v1660, 0
        %1753 = vmatprep.subr.mxu0 0.0
        %1754 = vmatpush1.msra.mxu0 %v1189
        %1755 = vmatprep.subr.mxu0 0.0
        %1756 = vmatpush1.msra.mxu0 0.0
        %1757 = vmatprep.subr.mxu0 0.0
        %1758 = vmatpush1.msra.mxu0 0.0
        %1759 = vmatprep.subr.mxu0 0.0
        %1760 = vmatpush1.msra.mxu0 0.0
        %1761 = vmatprep.subr.mxu0 0.0
        %1762 = vmatpush1.msra.mxu0 0.0
        %1763 = vmatprep.subr.mxu0 0.0
        %1764 = vmatpush1.msra.mxu0 0.0
        %1765 = vmatprep.subr.mxu0 0.0
        %1766 = vmatpush1.msra.mxu0 0.0
        %1767 = vmatprep.subr.mxu0 0.0
        %1768 = vmatpush1.msra.mxu0 0.0
        %1769 = vmatprep.subr.mxu0 0.0
        %1770 = vmatpush1.msra.mxu0 0.0
        %1771 = vmatprep.subr.mxu0 0.0
        %1772 = vmatpush1.msra.mxu0 0.0
        %1773 = vmatprep.subr.mxu0 0.0
        %1774 = vmatpush1.msra.mxu0 0.0
        %1775 = vmatprep.subr.mxu0 0.0
        %1776 = vmatpush1.msra.mxu0 0.0
        %1777 = vmatprep.subr.mxu0 0.0
        %1778 = vmatpush1.msra.mxu0 0.0
        %1779 = vmatprep.subr.mxu0 0.0
        %1780 = vmatpush1.msra.mxu0 0.0
        %1781 = vmatprep.subr.mxu0 0.0
        %1782 = vmatpush1.msra.mxu0 0.0
        %1783 = vmatprep.subr.mxu0 0.0
        %1784 = vmatpush1.msra.mxu0 0.0
        %1785 = vmatprep.subr.mxu0 0.0
        %1786 = vmatpush1.msra.mxu0 0.0
        %1787 = vmatprep.subr.mxu0 0.0
        %1788 = vmatpush1.msra.mxu0 0.0
        %1789 = vmatprep.subr.mxu0 0.0
        %1790 = vmatpush1.msra.mxu0 0.0
        %1791 = vmatprep.subr.mxu0 0.0
        %1792 = vmatpush1.msra.mxu0 0.0
        %1793 = vmatprep.subr.mxu0 0.0
        %1794 = vmatpush1.msra.mxu0 0.0
        %1795 = vmatprep.subr.mxu0 0.0
        %1796 = vmatpush1.msra.mxu0 0.0
        %1797 = vmatprep.subr.mxu0 0.0
        %1798 = vmatpush1.msra.mxu0 0.0
        %1799 = vmatprep.subr.mxu0 0.0
        %1800 = vmatpush1.msra.mxu0 0.0
        %1801 = vmatprep.subr.mxu0 0.0
        %1802 = vmatpush1.msra.mxu0 0.0
        %1803 = vmatprep.subr.mxu0 0.0
        %1804 = vmatpush1.msra.mxu0 0.0
        %1805 = vmatprep.subr.mxu0 0.0
        %1806 = vmatpush1.msra.mxu0 0.0
        %1807 = vmatprep.subr.mxu0 0.0
        %1808 = vmatpush1.msra.mxu0 0.0
        %1809 = vmatprep.subr.mxu0 0.0
        %1810 = vmatpush1.msra.mxu0 0.0
        %1811 = vmatprep.subr.mxu0 0.0
        %1812 = vmatpush1.msra.mxu0 0.0
        %1813 = vmatprep.subr.mxu0 0.0
        %1814 = vmatpush1.msra.mxu0 0.0
        %1815 = vmatprep.subr.mxu0 0.0
        %1816 = vmatpush1.msra.mxu0 0.0
        %1817 = vmatprep.mubr.f32.mxu0 0.0
        %1818 = vmatmul.mubr.f32.gmra.mrb[0].mxu0 %v1751
        %v1819 = vpop.f32.mrb[0].mxu0
        %v1820 = vadd.f32 0.0, %v1819
        %v1821 = vpop.f32.mrb[0].mxu0
        %1822 = vdwg.mxu0
        %v1824 = vsel %vm1336, %v1662, 0
        %1826 = vmatprep.subr.mxu0 0.0
        %1827 = vmatpush1.msra.mxu0 %v1259
        %1828 = vmatprep.subr.mxu0 0.0
        %1829 = vmatpush1.msra.mxu0 0.0
        %1830 = vmatprep.subr.mxu0 0.0
        %1831 = vmatpush1.msra.mxu0 0.0
        %1832 = vmatprep.subr.mxu0 0.0
        %1833 = vmatpush1.msra.mxu0 0.0
        %1834 = vmatprep.subr.mxu0 0.0
        %1835 = vmatpush1.msra.mxu0 0.0
        %1836 = vmatprep.subr.mxu0 0.0
        %1837 = vmatpush1.msra.mxu0 0.0
        %1838 = vmatprep.subr.mxu0 0.0
        %1839 = vmatpush1.msra.mxu0 0.0
        %1840 = vmatprep.subr.mxu0 0.0
        %1841 = vmatpush1.msra.mxu0 0.0
        %1842 = vmatprep.subr.mxu0 0.0
        %1843 = vmatpush1.msra.mxu0 0.0
        %1844 = vmatprep.subr.mxu0 0.0
        %1845 = vmatpush1.msra.mxu0 0.0
        %1846 = vmatprep.subr.mxu0 0.0
        %1847 = vmatpush1.msra.mxu0 0.0
        %1848 = vmatprep.subr.mxu0 0.0
        %1849 = vmatpush1.msra.mxu0 0.0
        %1850 = vmatprep.subr.mxu0 0.0
        %1851 = vmatpush1.msra.mxu0 0.0
        %1852 = vmatprep.subr.mxu0 0.0
        %1853 = vmatpush1.msra.mxu0 0.0
        %1854 = vmatprep.subr.mxu0 0.0
        %1855 = vmatpush1.msra.mxu0 0.0
        %1856 = vmatprep.subr.mxu0 0.0
        %1857 = vmatpush1.msra.mxu0 0.0
        %1858 = vmatprep.subr.mxu0 0.0
        %1859 = vmatpush1.msra.mxu0 0.0
        %1860 = vmatprep.subr.mxu0 0.0
        %1861 = vmatpush1.msra.mxu0 0.0
        %1862 = vmatprep.subr.mxu0 0.0
        %1863 = vmatpush1.msra.mxu0 0.0
        %1864 = vmatprep.subr.mxu0 0.0
        %1865 = vmatpush1.msra.mxu0 0.0
        %1866 = vmatprep.subr.mxu0 0.0
        %1867 = vmatpush1.msra.mxu0 0.0
        %1868 = vmatprep.subr.mxu0 0.0
        %1869 = vmatpush1.msra.mxu0 0.0
        %1870 = vmatprep.subr.mxu0 0.0
        %1871 = vmatpush1.msra.mxu0 0.0
        %1872 = vmatprep.subr.mxu0 0.0
        %1873 = vmatpush1.msra.mxu0 0.0
        %1874 = vmatprep.subr.mxu0 0.0
        %1875 = vmatpush1.msra.mxu0 0.0
        %1876 = vmatprep.subr.mxu0 0.0
        %1877 = vmatpush1.msra.mxu0 0.0
        %1878 = vmatprep.subr.mxu0 0.0
        %1879 = vmatpush1.msra.mxu0 0.0
        %1880 = vmatprep.subr.mxu0 0.0
        %1881 = vmatpush1.msra.mxu0 0.0
        %1882 = vmatprep.subr.mxu0 0.0
        %1883 = vmatpush1.msra.mxu0 0.0
        %1884 = vmatprep.subr.mxu0 0.0
        %1885 = vmatpush1.msra.mxu0 0.0
        %1886 = vmatprep.subr.mxu0 0.0
        %1887 = vmatpush1.msra.mxu0 0.0
        %1888 = vmatprep.subr.mxu0 0.0
        %1889 = vmatpush1.msra.mxu0 0.0
        %1890 = vmatprep.mubr.f32.mxu0 0.0
        %1891 = vmatmul.mubr.f32.gmra.mrb[0].mxu0 %v1824
        %v1892 = vpop.f32.mrb[0].mxu0
        %v1893 = vadd.f32 0.0, %v1892
        %v1894 = vpop.f32.mrb[0].mxu0
        %1895 = vdwg.mxu0
        %v1897 = vsel %vm1336, %v1664, 0
        %1899 = vmatprep.subr.mxu0 0.0
        %1900 = vmatpush1.msra.mxu0 %v1329
        %1901 = vmatprep.subr.mxu0 0.0
        %1902 = vmatpush1.msra.mxu0 0.0
        %1903 = vmatprep.subr.mxu0 0.0
        %1904 = vmatpush1.msra.mxu0 0.0
        %1905 = vmatprep.subr.mxu0 0.0
        %1906 = vmatpush1.msra.mxu0 0.0
        %1907 = vmatprep.subr.mxu0 0.0
        %1908 = vmatpush1.msra.mxu0 0.0
        %1909 = vmatprep.subr.mxu0 0.0
        %1910 = vmatpush1.msra.mxu0 0.0
        %1911 = vmatprep.subr.mxu0 0.0
        %1912 = vmatpush1.msra.mxu0 0.0
        %1913 = vmatprep.subr.mxu0 0.0
        %1914 = vmatpush1.msra.mxu0 0.0
        %1915 = vmatprep.subr.mxu0 0.0
        %1916 = vmatpush1.msra.mxu0 0.0
        %1917 = vmatprep.subr.mxu0 0.0
        %1918 = vmatpush1.msra.mxu0 0.0
        %1919 = vmatprep.subr.mxu0 0.0
        %1920 = vmatpush1.msra.mxu0 0.0
        %1921 = vmatprep.subr.mxu0 0.0
        %1922 = vmatpush1.msra.mxu0 0.0
        %1923 = vmatprep.subr.mxu0 0.0
        %1924 = vmatpush1.msra.mxu0 0.0
        %1925 = vmatprep.subr.mxu0 0.0
        %1926 = vmatpush1.msra.mxu0 0.0
        %1927 = vmatprep.subr.mxu0 0.0
        %1928 = vmatpush1.msra.mxu0 0.0
        %1929 = vmatprep.subr.mxu0 0.0
        %1930 = vmatpush1.msra.mxu0 0.0
        %1931 = vmatprep.subr.mxu0 0.0
        %1932 = vmatpush1.msra.mxu0 0.0
        %1933 = vmatprep.subr.mxu0 0.0
        %1934 = vmatpush1.msra.mxu0 0.0
        %1935 = vmatprep.subr.mxu0 0.0
        %1936 = vmatpush1.msra.mxu0 0.0
        %1937 = vmatprep.subr.mxu0 0.0
        %1938 = vmatpush1.msra.mxu0 0.0
        %1939 = vmatprep.subr.mxu0 0.0
        %1940 = vmatpush1.msra.mxu0 0.0
        %1941 = vmatprep.subr.mxu0 0.0
        %1942 = vmatpush1.msra.mxu0 0.0
        %1943 = vmatprep.subr.mxu0 0.0
        %1944 = vmatpush1.msra.mxu0 0.0
        %1945 = vmatprep.subr.mxu0 0.0
        %1946 = vmatpush1.msra.mxu0 0.0
        %1947 = vmatprep.subr.mxu0 0.0
        %1948 = vmatpush1.msra.mxu0 0.0
        %1949 = vmatprep.subr.mxu0 0.0
        %1950 = vmatpush1.msra.mxu0 0.0
        %1951 = vmatprep.subr.mxu0 0.0
        %1952 = vmatpush1.msra.mxu0 0.0
        %1953 = vmatprep.subr.mxu0 0.0
        %1954 = vmatpush1.msra.mxu0 0.0
        %1955 = vmatprep.subr.mxu0 0.0
        %1956 = vmatpush1.msra.mxu0 0.0
        %1957 = vmatprep.subr.mxu0 0.0
        %1958 = vmatpush1.msra.mxu0 0.0
        %1959 = vmatprep.subr.mxu0 0.0
        %1960 = vmatpush1.msra.mxu0 0.0
        %1961 = vmatprep.subr.mxu0 0.0
        %1962 = vmatpush1.msra.mxu0 0.0
        %1963 = vmatprep.mubr.f32.mxu0 0.0
        %1964 = vmatmul.mubr.f32.gmra.mrb[0].mxu0 %v1897
        %v1965 = vpop.f32.mrb[0].mxu0
        %v1966 = vadd.f32 0.0, %v1965
        %v1967 = vpop.f32.mrb[0].mxu0
        %1968 = vdwg.mxu0
        %v1969 = vrcp.pop %v1667
        %v1970 = vrcp.pop %v1670
        %v1971 = vrcp.pop %v1673
        %v1972 = vrcp.pop %v1676
        %v1973 = vmul.f32 %v1747, %v1969
        %v1974 = vmul.f32 %v1820, %v1970
        %v1975 = vmul.f32 %v1893, %v1971
        %v1976 = vmul.f32 %v1966, %v1972
        %v1977 = vld [vmem:[%s4] sm:$0xff]
        %v1978 = vld [vmem:[%s4 + $0x8] sm:$0xff]
        %v1979 = vld [vmem:[%s4 + $0x10] sm:$0xff]
        %v1980 = vld [vmem:[%s4 + $0x18] sm:$0xff]
        %v1982 = vsel %vm1336, %v1973, 0
        %1984 = vmatprep.subr.mxu0 0.0
        %1985 = vmatpush1.msra.mxu0 %v1977
        %1986 = vmatprep.subr.mxu0 0.0
        %1987 = vmatpush1.msra.mxu0 0.0
        %1988 = vmatprep.subr.mxu0 0.0
        %1989 = vmatpush1.msra.mxu0 0.0
        %1990 = vmatprep.subr.mxu0 0.0
        %1991 = vmatpush1.msra.mxu0 0.0
        %1992 = vmatprep.subr.mxu0 0.0
        %1993 = vmatpush1.msra.mxu0 0.0
        %1994 = vmatprep.subr.mxu0 0.0
        %1995 = vmatpush1.msra.mxu0 0.0
        %1996 = vmatprep.subr.mxu0 0.0
        %1997 = vmatpush1.msra.mxu0 0.0
        %1998 = vmatprep.subr.mxu0 0.0
        %1999 = vmatpush1.msra.mxu0 0.0
        %2000 = vmatprep.subr.mxu0 0.0
        %2001 = vmatpush1.msra.mxu0 0.0
        %2002 = vmatprep.subr.mxu0 0.0
        %2003 = vmatpush1.msra.mxu0 0.0
        %2004 = vmatprep.subr.mxu0 0.0
        %2005 = vmatpush1.msra.mxu0 0.0
        %2006 = vmatprep.subr.mxu0 0.0
        %2007 = vmatpush1.msra.mxu0 0.0
        %2008 = vmatprep.subr.mxu0 0.0
        %2009 = vmatpush1.msra.mxu0 0.0
        %2010 = vmatprep.subr.mxu0 0.0
        %2011 = vmatpush1.msra.mxu0 0.0
        %2012 = vmatprep.subr.mxu0 0.0
        %2013 = vmatpush1.msra.mxu0 0.0
        %2014 = vmatprep.subr.mxu0 0.0
        %2015 = vmatpush1.msra.mxu0 0.0
        %2016 = vmatprep.subr.mxu0 0.0
        %2017 = vmatpush1.msra.mxu0 0.0
        %2018 = vmatprep.subr.mxu0 0.0
        %2019 = vmatpush1.msra.mxu0 0.0
        %2020 = vmatprep.subr.mxu0 0.0
        %2021 = vmatpush1.msra.mxu0 0.0
        %2022 = vmatprep.subr.mxu0 0.0
        %2023 = vmatpush1.msra.mxu0 0.0
        %2024 = vmatprep.subr.mxu0 0.0
        %2025 = vmatpush1.msra.mxu0 0.0
        %2026 = vmatprep.subr.mxu0 0.0
        %2027 = vmatpush1.msra.mxu0 0.0
        %2028 = vmatprep.subr.mxu0 0.0
        %2029 = vmatpush1.msra.mxu0 0.0
        %2030 = vmatprep.subr.mxu0 0.0
        %2031 = vmatpush1.msra.mxu0 0.0
        %2032 = vmatprep.subr.mxu0 0.0
        %2033 = vmatpush1.msra.mxu0 0.0
        %2034 = vmatprep.subr.mxu0 0.0
        %2035 = vmatpush1.msra.mxu0 0.0
        %2036 = vmatprep.subr.mxu0 0.0
        %2037 = vmatpush1.msra.mxu0 0.0
        %2038 = vmatprep.subr.mxu0 0.0
        %2039 = vmatpush1.msra.mxu0 0.0
        %2040 = vmatprep.subr.mxu0 0.0
        %2041 = vmatpush1.msra.mxu0 0.0
        %2042 = vmatprep.subr.mxu0 0.0
        %2043 = vmatpush1.msra.mxu0 0.0
        %2044 = vmatprep.subr.mxu0 0.0
        %2045 = vmatpush1.msra.mxu0 0.0
        %2046 = vmatprep.subr.mxu0 0.0
        %2047 = vmatpush1.msra.mxu0 0.0
        %2048 = vmatprep.mubr.f32.mxu0 0.0
        %2049 = vmatmul.mubr.f32.gmra.mrb[0].mxu0 %v1982
        %v2050 = vpop.f32.mrb[0].mxu0
        %v2051 = vadd.f32 0.0, %v2050
        %v2052 = vpop.f32.mrb[0].mxu0
        %2053 = vdwg.mxu0
        %v2055 = vsel %vm1336, %v1974, 0
        %2057 = vmatprep.subr.mxu0 0.0
        %2058 = vmatpush1.msra.mxu0 %v1978
        %2059 = vmatprep.subr.mxu0 0.0
        %2060 = vmatpush1.msra.mxu0 0.0
        %2061 = vmatprep.subr.mxu0 0.0
        %2062 = vmatpush1.msra.mxu0 0.0
        %2063 = vmatprep.subr.mxu0 0.0
        %2064 = vmatpush1.msra.mxu0 0.0
        %2065 = vmatprep.subr.mxu0 0.0
        %2066 = vmatpush1.msra.mxu0 0.0
        %2067 = vmatprep.subr.mxu0 0.0
        %2068 = vmatpush1.msra.mxu0 0.0
        %2069 = vmatprep.subr.mxu0 0.0
        %2070 = vmatpush1.msra.mxu0 0.0
        %2071 = vmatprep.subr.mxu0 0.0
        %2072 = vmatpush1.msra.mxu0 0.0
        %2073 = vmatprep.subr.mxu0 0.0
        %2074 = vmatpush1.msra.mxu0 0.0
        %2075 = vmatprep.subr.mxu0 0.0
        %2076 = vmatpush1.msra.mxu0 0.0
        %2077 = vmatprep.subr.mxu0 0.0
        %2078 = vmatpush1.msra.mxu0 0.0
        %2079 = vmatprep.subr.mxu0 0.0
        %2080 = vmatpush1.msra.mxu0 0.0
        %2081 = vmatprep.subr.mxu0 0.0
        %2082 = vmatpush1.msra.mxu0 0.0
        %2083 = vmatprep.subr.mxu0 0.0
        %2084 = vmatpush1.msra.mxu0 0.0
        %2085 = vmatprep.subr.mxu0 0.0
        %2086 = vmatpush1.msra.mxu0 0.0
        %2087 = vmatprep.subr.mxu0 0.0
        %2088 = vmatpush1.msra.mxu0 0.0
        %2089 = vmatprep.subr.mxu0 0.0
        %2090 = vmatpush1.msra.mxu0 0.0
        %2091 = vmatprep.subr.mxu0 0.0
        %2092 = vmatpush1.msra.mxu0 0.0
        %2093 = vmatprep.subr.mxu0 0.0
        %2094 = vmatpush1.msra.mxu0 0.0
        %2095 = vmatprep.subr.mxu0 0.0
        %2096 = vmatpush1.msra.mxu0 0.0
        %2097 = vmatprep.subr.mxu0 0.0
        %2098 = vmatpush1.msra.mxu0 0.0
        %2099 = vmatprep.subr.mxu0 0.0
        %2100 = vmatpush1.msra.mxu0 0.0
        %2101 = vmatprep.subr.mxu0 0.0
        %2102 = vmatpush1.msra.mxu0 0.0
        %2103 = vmatprep.subr.mxu0 0.0
        %2104 = vmatpush1.msra.mxu0 0.0
        %2105 = vmatprep.subr.mxu0 0.0
        %2106 = vmatpush1.msra.mxu0 0.0
        %2107 = vmatprep.subr.mxu0 0.0
        %2108 = vmatpush1.msra.mxu0 0.0
        %2109 = vmatprep.subr.mxu0 0.0
        %2110 = vmatpush1.msra.mxu0 0.0
        %2111 = vmatprep.subr.mxu0 0.0
        %2112 = vmatpush1.msra.mxu0 0.0
        %2113 = vmatprep.subr.mxu0 0.0
        %2114 = vmatpush1.msra.mxu0 0.0
        %2115 = vmatprep.subr.mxu0 0.0
        %2116 = vmatpush1.msra.mxu0 0.0
        %2117 = vmatprep.subr.mxu0 0.0
        %2118 = vmatpush1.msra.mxu0 0.0
        %2119 = vmatprep.subr.mxu0 0.0
        %2120 = vmatpush1.msra.mxu0 0.0
        %2121 = vmatprep.mubr.f32.mxu0 0.0
        %2122 = vmatmul.mubr.f32.gmra.mrb[0].mxu0 %v2055
        %v2123 = vpop.f32.mrb[0].mxu0
        %v2124 = vadd.f32 0.0, %v2123
        %v2125 = vpop.f32.mrb[0].mxu0
        %2126 = vdwg.mxu0
        %v2128 = vsel %vm1336, %v1975, 0
        %2130 = vmatprep.subr.mxu0 0.0
        %2131 = vmatpush1.msra.mxu0 %v1979
        %2132 = vmatprep.subr.mxu0 0.0
        %2133 = vmatpush1.msra.mxu0 0.0
        %2134 = vmatprep.subr.mxu0 0.0
        %2135 = vmatpush1.msra.mxu0 0.0
        %2136 = vmatprep.subr.mxu0 0.0
        %2137 = vmatpush1.msra.mxu0 0.0
        %2138 = vmatprep.subr.mxu0 0.0
        %2139 = vmatpush1.msra.mxu0 0.0
        %2140 = vmatprep.subr.mxu0 0.0
        %2141 = vmatpush1.msra.mxu0 0.0
        %2142 = vmatprep.subr.mxu0 0.0
        %2143 = vmatpush1.msra.mxu0 0.0
        %2144 = vmatprep.subr.mxu0 0.0
        %2145 = vmatpush1.msra.mxu0 0.0
        %2146 = vmatprep.subr.mxu0 0.0
        %2147 = vmatpush1.msra.mxu0 0.0
        %2148 = vmatprep.subr.mxu0 0.0
        %2149 = vmatpush1.msra.mxu0 0.0
        %2150 = vmatprep.subr.mxu0 0.0
        %2151 = vmatpush1.msra.mxu0 0.0
        %2152 = vmatprep.subr.mxu0 0.0
        %2153 = vmatpush1.msra.mxu0 0.0
        %2154 = vmatprep.subr.mxu0 0.0
        %2155 = vmatpush1.msra.mxu0 0.0
        %2156 = vmatprep.subr.mxu0 0.0
        %2157 = vmatpush1.msra.mxu0 0.0
        %2158 = vmatprep.subr.mxu0 0.0
        %2159 = vmatpush1.msra.mxu0 0.0
        %2160 = vmatprep.subr.mxu0 0.0
        %2161 = vmatpush1.msra.mxu0 0.0
        %2162 = vmatprep.subr.mxu0 0.0
        %2163 = vmatpush1.msra.mxu0 0.0
        %2164 = vmatprep.subr.mxu0 0.0
        %2165 = vmatpush1.msra.mxu0 0.0
        %2166 = vmatprep.subr.mxu0 0.0
        %2167 = vmatpush1.msra.mxu0 0.0
        %2168 = vmatprep.subr.mxu0 0.0
        %2169 = vmatpush1.msra.mxu0 0.0
        %2170 = vmatprep.subr.mxu0 0.0
        %2171 = vmatpush1.msra.mxu0 0.0
        %2172 = vmatprep.subr.mxu0 0.0
        %2173 = vmatpush1.msra.mxu0 0.0
        %2174 = vmatprep.subr.mxu0 0.0
        %2175 = vmatpush1.msra.mxu0 0.0
        %2176 = vmatprep.subr.mxu0 0.0
        %2177 = vmatpush1.msra.mxu0 0.0
        %2178 = vmatprep.subr.mxu0 0.0
        %2179 = vmatpush1.msra.mxu0 0.0
        %2180 = vmatprep.subr.mxu0 0.0
        %2181 = vmatpush1.msra.mxu0 0.0
        %2182 = vmatprep.subr.mxu0 0.0
        %2183 = vmatpush1.msra.mxu0 0.0
        %2184 = vmatprep.subr.mxu0 0.0
        %2185 = vmatpush1.msra.mxu0 0.0
        %2186 = vmatprep.subr.mxu0 0.0
        %2187 = vmatpush1.msra.mxu0 0.0
        %2188 = vmatprep.subr.mxu0 0.0
        %2189 = vmatpush1.msra.mxu0 0.0
        %2190 = vmatprep.subr.mxu0 0.0
        %2191 = vmatpush1.msra.mxu0 0.0
        %2192 = vmatprep.subr.mxu0 0.0
        %2193 = vmatpush1.msra.mxu0 0.0
        %2194 = vmatprep.mubr.f32.mxu0 0.0
        %2195 = vmatmul.mubr.f32.gmra.mrb[0].mxu0 %v2128
        %v2196 = vpop.f32.mrb[0].mxu0
        %v2197 = vadd.f32 0.0, %v2196
        %v2198 = vpop.f32.mrb[0].mxu0
        %2199 = vdwg.mxu0
        %v2201 = vsel %vm1336, %v1976, 0
        %2203 = vmatprep.subr.mxu0 0.0
        %2204 = vmatpush1.msra.mxu0 %v1980
        %2205 = vmatprep.subr.mxu0 0.0
        %2206 = vmatpush1.msra.mxu0 0.0
        %2207 = vmatprep.subr.mxu0 0.0
        %2208 = vmatpush1.msra.mxu0 0.0
        %2209 = vmatprep.subr.mxu0 0.0
        %2210 = vmatpush1.msra.mxu0 0.0
        %2211 = vmatprep.subr.mxu0 0.0
        %2212 = vmatpush1.msra.mxu0 0.0
        %2213 = vmatprep.subr.mxu0 0.0
        %2214 = vmatpush1.msra.mxu0 0.0
        %2215 = vmatprep.subr.mxu0 0.0
        %2216 = vmatpush1.msra.mxu0 0.0
        %2217 = vmatprep.subr.mxu0 0.0
        %2218 = vmatpush1.msra.mxu0 0.0
        %2219 = vmatprep.subr.mxu0 0.0
        %2220 = vmatpush1.msra.mxu0 0.0
        %2221 = vmatprep.subr.mxu0 0.0
        %2222 = vmatpush1.msra.mxu0 0.0
        %2223 = vmatprep.subr.mxu0 0.0
        %2224 = vmatpush1.msra.mxu0 0.0
        %2225 = vmatprep.subr.mxu0 0.0
        %2226 = vmatpush1.msra.mxu0 0.0
        %2227 = vmatprep.subr.mxu0 0.0
        %2228 = vmatpush1.msra.mxu0 0.0
        %2229 = vmatprep.subr.mxu0 0.0
        %2230 = vmatpush1.msra.mxu0 0.0
        %2231 = vmatprep.subr.mxu0 0.0
        %2232 = vmatpush1.msra.mxu0 0.0
        %2233 = vmatprep.subr.mxu0 0.0
        %2234 = vmatpush1.msra.mxu0 0.0
        %2235 = vmatprep.subr.mxu0 0.0
        %2236 = vmatpush1.msra.mxu0 0.0
        %2237 = vmatprep.subr.mxu0 0.0
        %2238 = vmatpush1.msra.mxu0 0.0
        %2239 = vmatprep.subr.mxu0 0.0
        %2240 = vmatpush1.msra.mxu0 0.0
        %2241 = vmatprep.subr.mxu0 0.0
        %2242 = vmatpush1.msra.mxu0 0.0
        %2243 = vmatprep.subr.mxu0 0.0
        %2244 = vmatpush1.msra.mxu0 0.0
        %2245 = vmatprep.subr.mxu0 0.0
        %2246 = vmatpush1.msra.mxu0 0.0
        %2247 = vmatprep.subr.mxu0 0.0
        %2248 = vmatpush1.msra.mxu0 0.0
        %2249 = vmatprep.subr.mxu0 0.0
        %2250 = vmatpush1.msra.mxu0 0.0
        %2251 = vmatprep.subr.mxu0 0.0
        %2252 = vmatpush1.msra.mxu0 0.0
        %2253 = vmatprep.subr.mxu0 0.0
        %2254 = vmatpush1.msra.mxu0 0.0
        %2255 = vmatprep.subr.mxu0 0.0
        %2256 = vmatpush1.msra.mxu0 0.0
        %2257 = vmatprep.subr.mxu0 0.0
        %2258 = vmatpush1.msra.mxu0 0.0
        %2259 = vmatprep.subr.mxu0 0.0
        %2260 = vmatpush1.msra.mxu0 0.0
        %2261 = vmatprep.subr.mxu0 0.0
        %2262 = vmatpush1.msra.mxu0 0.0
        %2263 = vmatprep.subr.mxu0 0.0
        %2264 = vmatpush1.msra.mxu0 0.0
        %2265 = vmatprep.subr.mxu0 0.0
        %2266 = vmatpush1.msra.mxu0 0.0
        %2267 = vmatprep.mubr.f32.mxu0 0.0
        %2268 = vmatmul.mubr.f32.gmra.mrb[0].mxu0 %v2201
        %v2269 = vpop.f32.mrb[0].mxu0
        %v2270 = vadd.f32 0.0, %v2269
        %v2271 = vpop.f32.mrb[0].mxu0
        %2272 = vdwg.mxu0
        %v2273 = vsel %vm412, %v2051, 0.0
        %v2274 = vsel %vm412, %v2124, 0.0
        %v2275 = vadd.f32 %v2273, %v2274
        %v2276 = vsel %vm412, %v2197, 0.0
        %v2277 = vadd.f32 %v2275, %v2276
        %v2278 = vsel %vm412, %v2270, 0.0
        %v2279 = vadd.f32 %v2277, %v2278
        %v2280 = vadd.f32 %v409, %v2279
        %v2281 = vld [vmem:[%s5] sm:$0x1]
        %v2283 = vlaneseq
        %v2284 = vshrl.u32 %v2283, 7
        %v2285 = vsub.s32 0, %v2284
        %v2286 = vrot.slane %v2281, %v2285
        %v2288 = vadd.f32 %v2280, %v2286
        %v2289 = vld [vmem:[%s6] sm:$0x1]
        %v2290 = vld [vmem:[%s7] sm:$0x1]
        %v2291 = vsel %vm412, %v2288, 0.0
        %2292 = vadd.xlane.f32.xlu0 %v2291
        %v2293 = vpop.xlane.xlu0 %2292
        %v2294 = vmul.f32 %v2293, %v416
        %v2295 = vsub.f32 %v2288, %v2294
        %v2296 = vmul.f32 %v2295, %v2295
        %v2297 = vsel %vm412, %v2296, 0.0
        %2298 = vadd.xlane.f32.xlu0 %v2297
        %v2299 = vpop.xlane.xlu0 %2298
        %v2300 = vmul.f32 %v2299, %v416
        %v2301 = vadd.f32 %v2300, 1e-05
        %v2302 = vrsqrt.pop %v2301
        %v2303 = vmul.f32 %v2295, %v2302
        %v2305 = vlaneseq
        %v2306 = vshrl.u32 %v2305, 7
        %v2307 = vsub.s32 0, %v2306
        %v2308 = vrot.slane %v2289, %v2307
        %v2310 = vmul.f32 %v2303, %v2308
        %v2312 = vlaneseq
        %v2313 = vshrl.u32 %v2312, 7
        %v2314 = vsub.s32 0, %v2313
        %v2315 = vrot.slane %v2290, %v2314
        %v2317 = vadd.f32 %v2310, %v2315
        %v2318 = vld [vmem:[%s8] sm:$0xff]
        %v2319 = vld [vmem:[%s8 + $0x8] sm:$0xff]
        %v2320 = vld [vmem:[%s8 + $0x10] sm:$0xff]
        %v2321 = vld [vmem:[%s8 + $0x18] sm:$0xff]
        %v2322 = vld [vmem:[%s9] sm:$0x1]
        %v2324 = vlaneseq
        %v2325 = vshrl.u32 %v2324, 7
        %v2326 = vsub.s32 0, %v2325
        %v2327 = vrot.slane %v2322, %v2326
        %v2330 = vsel %vm412, %v2317, 0
        %2332 = vmatprep.subr.mxu0 0.0
        %2333 = vmatpush1.msra.mxu0 %v2318
        %2334 = vmatprep.subr.mxu0 0.0
        %2335 = vmatpush1.msra.mxu0 %v2319
        %2336 = vmatprep.subr.mxu0 0.0
        %2337 = vmatpush1.msra.mxu0 %v2320
        %2338 = vmatprep.subr.mxu0 0.0
        %2339 = vmatpush1.msra.mxu0 %v2321
        %2340 = vmatprep.subr.mxu0 0.0
        %2341 = vmatpush1.msra.mxu0 0.0
        %2342 = vmatprep.subr.mxu0 0.0
        %2343 = vmatpush1.msra.mxu0 0.0
        %2344 = vmatprep.subr.mxu0 0.0
        %2345 = vmatpush1.msra.mxu0 0.0
        %2346 = vmatprep.subr.mxu0 0.0
        %2347 = vmatpush1.msra.mxu0 0.0
        %2348 = vmatprep.subr.mxu0 0.0
        %2349 = vmatpush1.msra.mxu0 0.0
        %2350 = vmatprep.subr.mxu0 0.0
        %2351 = vmatpush1.msra.mxu0 0.0
        %2352 = vmatprep.subr.mxu0 0.0
        %2353 = vmatpush1.msra.mxu0 0.0
        %2354 = vmatprep.subr.mxu0 0.0
        %2355 = vmatpush1.msra.mxu0 0.0
        %2356 = vmatprep.subr.mxu0 0.0
        %2357 = vmatpush1.msra.mxu0 0.0
        %2358 = vmatprep.subr.mxu0 0.0
        %2359 = vmatpush1.msra.mxu0 0.0
        %2360 = vmatprep.subr.mxu0 0.0
        %2361 = vmatpush1.msra.mxu0 0.0
        %2362 = vmatprep.subr.mxu0 0.0
        %2363 = vmatpush1.msra.mxu0 0.0
        %2364 = vmatprep.subr.mxu0 0.0
        %2365 = vmatpush1.msra.mxu0 0.0
        %2366 = vmatprep.subr.mxu0 0.0
        %2367 = vmatpush1.msra.mxu0 0.0
        %2368 = vmatprep.subr.mxu0 0.0
        %2369 = vmatpush1.msra.mxu0 0.0
        %2370 = vmatprep.subr.mxu0 0.0
        %2371 = vmatpush1.msra.mxu0 0.0
        %2372 = vmatprep.subr.mxu0 0.0
        %2373 = vmatpush1.msra.mxu0 0.0
        %2374 = vmatprep.subr.mxu0 0.0
        %2375 = vmatpush1.msra.mxu0 0.0
        %2376 = vmatprep.subr.mxu0 0.0
        %2377 = vmatpush1.msra.mxu0 0.0
        %2378 = vmatprep.subr.mxu0 0.0
        %2379 = vmatpush1.msra.mxu0 0.0
        %2380 = vmatprep.subr.mxu0 0.0
        %2381 = vmatpush1.msra.mxu0 0.0
        %2382 = vmatprep.subr.mxu0 0.0
        %2383 = vmatpush1.msra.mxu0 0.0
        %2384 = vmatprep.subr.mxu0 0.0
        %2385 = vmatpush1.msra.mxu0 0.0
        %2386 = vmatprep.subr.mxu0 0.0
        %2387 = vmatpush1.msra.mxu0 0.0
        %2388 = vmatprep.subr.mxu0 0.0
        %2389 = vmatpush1.msra.mxu0 0.0
        %2390 = vmatprep.subr.mxu0 0.0
        %2391 = vmatpush1.msra.mxu0 0.0
        %2392 = vmatprep.subr.mxu0 0.0
        %2393 = vmatpush1.msra.mxu0 0.0
        %2394 = vmatprep.subr.mxu0 0.0
        %2395 = vmatpush1.msra.mxu0 0.0
        %2396 = vmatprep.mubr.f32.mxu0 0.0
        %2397 = vmatmul.mubr.f32.gmra.mrb[0].mxu0 %v2330
        %v2398 = vpop.f32.mrb[0].mxu0
        %v2399 = vadd.f32 %v2327, %v2398
        %v2400 = vpop.f32.mrb[0].mxu0
        %2401 = vdwg.mxu0
        %v2402 = vmax.f32 %v2399, 0.0
        %v2403 = vld [vmem:[%s10] sm:$0xff]
        %v2404 = vld [vmem:[%s10 + $0x8] sm:$0xff]
        %v2405 = vld [vmem:[%s10 + $0x10] sm:$0xff]
        %v2406 = vld [vmem:[%s10 + $0x18] sm:$0xff]
        %v2407 = vld [vmem:[%s10 + $0x20] sm:$0xff]
        %v2408 = vld [vmem:[%s10 + $0x28] sm:$0xff]
        %v2409 = vld [vmem:[%s10 + $0x30] sm:$0xff]
        %v2410 = vld [vmem:[%s10 + $0x38] sm:$0xff]
        %v2411 = vld [vmem:[%s10 + $0x40] sm:$0xff]
        %v2412 = vld [vmem:[%s10 + $0x48] sm:$0xff]
        %v2413 = vld [vmem:[%s10 + $0x50] sm:$0xff]
        %v2414 = vld [vmem:[%s10 + $0x58] sm:$0xff]
        %v2415 = vld [vmem:[%s10 + $0x60] sm:$0xff]
        %v2416 = vld [vmem:[%s10 + $0x68] sm:$0xff]
        %v2417 = vld [vmem:[%s10 + $0x70] sm:$0xff]
        %v2418 = vld [vmem:[%s10 + $0x78] sm:$0xff]
        %v2419 = vld [vmem:[%s11] sm:$0x1]
        %v2421 = vlaneseq
        %v2422 = vshrl.u32 %v2421, 7
        %v2423 = vsub.s32 0, %v2422
        %v2424 = vrot.slane %v2419, %v2423
        %2426 = vmatprep.subr.mxu0 0.0
        %2427 = vmatpush1.msra.mxu0 %v2403
        %2428 = vmatprep.subr.mxu0 0.0
        %2429 = vmatpush1.msra.mxu0 %v2404
        %2430 = vmatprep.subr.mxu0 0.0
        %2431 = vmatpush1.msra.mxu0 %v2405
        %2432 = vmatprep.subr.mxu0 0.0
        %2433 = vmatpush1.msra.mxu0 %v2406
        %2434 = vmatprep.subr.mxu0 0.0
        %2435 = vmatpush1.msra.mxu0 %v2407
        %2436 = vmatprep.subr.mxu0 0.0
        %2437 = vmatpush1.msra.mxu0 %v2408
        %2438 = vmatprep.subr.mxu0 0.0
        %2439 = vmatpush1.msra.mxu0 %v2409
        %2440 = vmatprep.subr.mxu0 0.0
        %2441 = vmatpush1.msra.mxu0 %v2410
        %2442 = vmatprep.subr.mxu0 0.0
        %2443 = vmatpush1.msra.mxu0 %v2411
        %2444 = vmatprep.subr.mxu0 0.0
        %2445 = vmatpush1.msra.mxu0 %v2412
        %2446 = vmatprep.subr.mxu0 0.0
        %2447 = vmatpush1.msra.mxu0 %v2413
        %2448 = vmatprep.subr.mxu0 0.0
        %2449 = vmatpush1.msra.mxu0 %v2414
        %2450 = vmatprep.subr.mxu0 0.0
        %2451 = vmatpush1.msra.mxu0 %v2415
        %2452 = vmatprep.subr.mxu0 0.0
        %2453 = vmatpush1.msra.mxu0 %v2416
        %2454 = vmatprep.subr.mxu0 0.0
        %2455 = vmatpush1.msra.mxu0 %v2417
        %2456 = vmatprep.subr.mxu0 0.0
        %2457 = vmatpush1.msra.mxu0 %v2418
        %2458 = vmatprep.subr.mxu0 0.0
        %2459 = vmatpush1.msra.mxu0 0.0
        %2460 = vmatprep.subr.mxu0 0.0
        %2461 = vmatpush1.msra.mxu0 0.0
        %2462 = vmatprep.subr.mxu0 0.0
        %2463 = vmatpush1.msra.mxu0 0.0
        %2464 = vmatprep.subr.mxu0 0.0
        %2465 = vmatpush1.msra.mxu0 0.0
        %2466 = vmatprep.subr.mxu0 0.0
        %2467 = vmatpush1.msra.mxu0 0.0
        %2468 = vmatprep.subr.mxu0 0.0
        %2469 = vmatpush1.msra.mxu0 0.0
        %2470 = vmatprep.subr.mxu0 0.0
        %2471 = vmatpush1.msra.mxu0 0.0
        %2472 = vmatprep.subr.mxu0 0.0
        %2473 = vmatpush1.msra.mxu0 0.0
        %2474 = vmatprep.subr.mxu0 0.0
        %2475 = vmatpush1.msra.mxu0 0.0
        %2476 = vmatprep.subr.mxu0 0.0
        %2477 = vmatpush1.msra.mxu0 0.0
        %2478 = vmatprep.subr.mxu0 0.0
        %2479 = vmatpush1.msra.mxu0 0.0
        %2480 = vmatprep.subr.mxu0 0.0
        %2481 = vmatpush1.msra.mxu0 0.0
        %2482 = vmatprep.subr.mxu0 0.0
        %2483 = vmatpush1.msra.mxu0 0.0
        %2484 = vmatprep.subr.mxu0 0.0
        %2485 = vmatpush1.msra.mxu0 0.0
        %2486 = vmatprep.subr.mxu0 0.0
        %2487 = vmatpush1.msra.mxu0 0.0
        %2488 = vmatprep.subr.mxu0 0.0
        %2489 = vmatpush1.msra.mxu0 0.0
        %2490 = vmatprep.mubr.f32.mxu0 0.0
        %2491 = vmatmul.mubr.f32.gmra.mrb[0].mxu0 %v2402
        %v2492 = vpop.f32.mrb[0].mxu0
        %v2493 = vadd.f32 %v2424, %v2492
        %v2494 = vpop.f32.mrb[0].mxu0
        %2495 = vdwg.mxu0
        %v2496 = vadd.f32 %v2288, %v2493
        %2497 = vst.msk [vmem:[%s404] sm:$0xff] %vm412, %v2496
        %s2498 = sand.u32 %s291, 1
        %s2499 = scalar_lea.sflag [#allocation3], %s2498
        %s2500 = sand.u32 %s291, 1
        %s2501 = smul.addr %s2500, 8
        %s2502 = scalar_lea.vmem [#allocation2], %s2501
        // Predicated region
        $region69: #{tpu_custom_call.1} parent=67 // pred_check
          %p2503 = pneg %p301
        $region70: #{tpu_custom_call.1} parent=67 // pred_check_branch
          %2505 = sbr.rel (%p2503) target = $region72
        $region71: #{tpu_custom_call.1} parent=67 // pred_region
          %s2507 = ssub.s32 128, 128
          %2508 = vsyncadd %s2499, %s2507
          %s2509 = smul.addr %s26, 128
          %s2510 = scalar_lea.hbm %s12, %s2509
          %s2512 = sshll.u32 %s2502, 4
          %s2513 = int_to_ptr.vmem [resolvable:$true] %s2512
          %2515 = dma.vmem_to_hbm [thread:$0]  %s2513, 128, %s2510, %s2499
        $region72: #{tpu_custom_call.1} parent=67 // pred_fallthru
          _
      $region68: #{tpu_custom_call.1} parent=5 // pred_fallthru
        _
      %p2516 = scmp.le.s32.totalorder 2, %s21
      // Predicated region
      $region73: #{tpu_custom_call.1} parent=5 // pred_check
        %p2517 = pneg %p2516
      $region74: #{tpu_custom_call.1} parent=5 // pred_check_branch
        %2519 = sbr.rel (%p2517) target = $region76
      $region75: #{tpu_custom_call.1} parent=5 // pred_region
        %s2520 = ssub.s32 %s21, 2
        // Predicated region
        $region77: #{tpu_custom_call.1} parent=75 // pred_check
          %p2521 = pneg %p307
        $region78: #{tpu_custom_call.1} parent=75 // pred_check_branch
          %2523 = sbr.rel (%p2521) target = $region80
        $region79: #{tpu_custom_call.1} parent=75 // pred_region
          %s2524 = sand.u32 %s292, 1
          %s2525 = scalar_lea.sflag [#allocation3], %s2524
          %s2526 = sand.u32 %s292, 1
          %s2527 = smul.addr %s2526, 8
          %s2528 = scalar_lea.vmem [#allocation2], %s2527
          %2529 = dma.done %s2525, 128
        $region80: #{tpu_custom_call.1} parent=75 // pred_fallthru
          _
      $region76: #{tpu_custom_call.1} parent=5 // pred_fallthru
        _
    $region6: #{tpu_custom_call.1} parent=1 // loop_footer
      %s25 = sadd.s32 1, %s21
    $region7: #{tpu_custom_call.1} parent=1 // loop_footer_branch
      %20 = sbr.rel target = $region3
    $region8: #{tpu_custom_call.1} parent=1 // loop_exit
      _
    %2530 = vsyncpa [#allocation3], 1
    %s2531 = scalar_lea.sflag [#allocation3], 1
    %2532 = vsyncpa %s2531, 1

</llo_original>
